<compile_context>
chip_gen: v7x
topology: tpu7x:2x2x1
jax: 0.10.0
libtpu: 0.0.40
codegen_flags: <defaults>
</compile_context>

<pallas_src>
import functools

import jax
import jax.numpy as jnp
from jax.experimental import pallas as pl
from jax.experimental.pallas import tpu as pltpu


def _resnet_block_kernel(x_ref, m_ref, w1_ref, b1_ref, w2_ref, b2_ref, out_ref,
                         *, H, W):
    """One batch element per grid step.

    x_ref  : (1, C, H*W)  input, channels on sublanes, flattened H*W on lanes
    m_ref  : (4, H*W)     int32 edge masks: [w==0, w==W-1, h==0, h==H-1]
    w*_ref : (9, C, C)    conv weights, tap t = kh*3 + kw, each (Cout, Cin)
    b*_ref : (C, 1)       f32 bias
    out_ref: (1, C, H*W)  f32 output
    """
    C = x_ref.shape[1]
    HW = H * W
    f32 = jnp.float32

    x = x_ref[0]                        # (C, HW) in compute dtype
    cdt = x.dtype

    # Reflection boundary masks, (1, HW) bool, broadcast over channels in where.
    col0 = m_ref[0:1, :] != 0           # w == 0
    colL = m_ref[1:2, :] != 0           # w == W - 1
    row0 = m_ref[2:3, :] != 0           # h == 0
    rowL = m_ref[3:4, :] != 0           # h == H - 1

    def shifted_taps(img):
        # img: (C, HW).  Returns the 9 reflect-padded 3x3 tap views in the
        # flattened layout, ordered t = (dh+1)*3 + (dw+1) to match the weights.
        # All shifts are XLU lane rotations; wrapped entries only ever land on
        # boundary positions, where the reflection fix-up overwrites them.
        rp1 = pltpu.roll(img, HW - 1, axis=1)      # [p] = img[p+1]
        rm1 = pltpu.roll(img, 1, axis=1)           # [p] = img[p-1]
        xl = jnp.where(col0, rp1, rm1)             # dw=-1 (reflect w=0 -> w=1)
        xr = jnp.where(colL, rm1, rp1)             # dw=+1 (reflect w=W-1 -> W-2)

        taps = [None] * 9
        for dwi, xc in enumerate((xl, img, xr)):   # dw = -1, 0, +1
            rpW = pltpu.roll(xc, HW - W, axis=1)   # [p] = xc[p+W]
            rmW = pltpu.roll(xc, W, axis=1)        # [p] = xc[p-W]
            taps[0 * 3 + dwi] = jnp.where(row0, rpW, rmW)   # dh=-1 (h=0 -> h=1)
            taps[1 * 3 + dwi] = xc                          # dh= 0
            taps[2 * 3 + dwi] = jnp.where(rowL, rmW, rpW)   # dh=+1 (H-1 -> H-2)
        return taps

    def conv3x3(img, w_ref, b_ref):
        # 9 accumulating MXU dots, K = C per tap, f32 accumulation.
        # Bias folded into the accumulator init (lane broadcast of (C,1)).
        acc = jnp.broadcast_to(b_ref[...].astype(f32), (C, HW))
        for t, tap in enumerate(shifted_taps(img)):
            acc = acc + jnp.dot(w_ref[t], tap, preferred_element_type=f32)
        return acc                                   # (C, HW) f32

    h = jnp.maximum(conv3x3(x, w1_ref, b1_ref), 0.0)          # ReLU in f32
    y = conv3x3(h.astype(cdt), w2_ref, b2_ref)                # (C, HW) f32
    out_ref[...] = (x.astype(f32) + y)[None].astype(out_ref.dtype)


def _prep_weight(w_oihw):
    """PyTorch conv weight (Cout, Cin, 3, 3) -> (9, Cout, Cin), tap t = kh*3+kw."""
    cout, cin = w_oihw.shape[0], w_oihw.shape[1]
    return jnp.transpose(w_oihw, (2, 3, 0, 1)).reshape(9, cout, cin)


def resnet_block_forward(x_nchw, params, *, compute_dtype=jnp.bfloat16):
    """Forward of ResnetBlock. x_nchw: (N, C, H, W) float32."""
    N, C, H, W = x_nchw.shape
    if H < 2 or W < 2:
        raise ValueError("ReflectionPad2d(1) requires H >= 2 and W >= 2")
    HW = H * W
    cdt = compute_dtype

    x = x_nchw.astype(cdt).reshape(N, C, HW)              # lane-dense layout

    w1 = _prep_weight(params["w1"]).astype(cdt)            # (9, C, C)
    w2 = _prep_weight(params["w2"]).astype(cdt)
    b1 = params["b1"].reshape(C, 1).astype(jnp.float32)
    b2 = params["b2"].reshape(C, 1).astype(jnp.float32)

    # Edge masks for the in-kernel reflection fix-ups (avoids vector div/mod).
    lane = jnp.arange(HW, dtype=jnp.int32)
    col = lane % W
    row = lane // W
    masks = jnp.stack(
        [col == 0, col == W - 1, row == 0, row == H - 1]).astype(jnp.int32)

    kernel = functools.partial(_resnet_block_kernel, H=H, W=W)

    # Explicit VMEM budget: double-buffered x/out blocks + weights + in-kernel
    # f32 working set.  Clamped to a value that is safe on v5e/v6e/v7x.
    isz = jnp.dtype(cdt).itemsize
    est = (2 * C * HW * isz            # x block, double-buffered
           + 2 * C * HW * 4            # out block (f32), double-buffered
           + 2 * 2 * 9 * C * C * isz   # w1 + w2, double-buffered
           + 10 * C * HW * 4)          # acc / h / shifted tap views
    vmem_limit = int(min(64 * 1024 * 1024, max(32 * 1024 * 1024, 2 * est)))

    out = pl.pallas_call(
        kernel,
        out_shape=jax.ShapeDtypeStruct((N, C, HW), jnp.float32),
        grid_spec=pltpu.PrefetchScalarGridSpec(
            num_scalar_prefetch=0,
            grid=(N,),
            in_specs=[
                pl.BlockSpec((1, C, HW), lambda n: (n, 0, 0)),
                pl.BlockSpec((4, HW), lambda n: (0, 0)),
                pl.BlockSpec((9, C, C), lambda n: (0, 0, 0)),
                pl.BlockSpec((C, 1), lambda n: (0, 0)),
                pl.BlockSpec((9, C, C), lambda n: (0, 0, 0)),
                pl.BlockSpec((C, 1), lambda n: (0, 0)),
            ],
            out_specs=pl.BlockSpec((1, C, HW), lambda n: (n, 0, 0)),
        ),
        compiler_params=pltpu.CompilerParams(
            dimension_semantics=("parallel",),
            vmem_limit_bytes=vmem_limit),
    )(x, masks, w1, b1, w2, b2)

    return out.reshape(N, C, H, W)


def init_params(key, dim):
    """Weights in PyTorch layout: conv (Cout, Cin, kh, kw), bias (Cout,)."""
    k1, k2, k3, k4 = jax.random.split(key, 4)
    scale = 1.0 / jnp.sqrt(dim * 9.0)
    w1 = jax.random.uniform(k1, (dim, dim, 3, 3), jnp.float32, -scale, scale)
    b1 = jax.random.uniform(k2, (dim,), jnp.float32, -scale, scale)
    w2 = jax.random.uniform(k3, (dim, dim, 3, 3), jnp.float32, -scale, scale)
    b2 = jax.random.uniform(k4, (dim,), jnp.float32, -scale, scale)
    return {"w1": w1, "b1": b1, "w2": w2, "b2": b2}


def _reference_forward(x_nchw, params):
    """Pure-JAX reference (lax conv, NCHW/OIHW) for a sanity check."""
    def conv(xi, w, b):
        xp = jnp.pad(xi, ((0, 0), (0, 0), (1, 1), (1, 1)), mode="reflect")
        y = jax.lax.conv_general_dilated(
            xp, w, window_strides=(1, 1), padding="VALID",
            dimension_numbers=("NCHW", "OIHW", "NCHW"))
        return y + b[None, :, None, None]

    h = jax.nn.relu(conv(x_nchw, params["w1"], params["b1"]))
    y = conv(h, params["w2"], params["b2"]) + x_nchw
    return y


if __name__ == "__main__":
    key = jax.random.PRNGKey(0)
    kx, kp = jax.random.split(key)

    N, C, H, W = 2, 4, 16, 16           # dim = 4
    x = jax.random.normal(kx, (N, C, H, W), dtype=jnp.float32)
    params = init_params(kp, C)

    ref = _reference_forward(x, params)

    # f32 compute path: tight check against the f32 lax reference.
    out_f32 = resnet_block_forward(x, params, compute_dtype=jnp.float32)
    out_f32 = jax.block_until_ready(out_f32)
    assert out_f32.shape == (N, C, H, W)
    assert jnp.allclose(out_f32, ref, atol=1e-4, rtol=1e-3), "f32 mismatch vs reference"

    # bf16 MXU inputs + f32 accumulation (production path per perf review).
    out_bf16 = resnet_block_forward(x, params, compute_dtype=jnp.bfloat16)
    out_bf16 = jax.block_until_ready(out_bf16)
    assert jnp.allclose(out_bf16, ref, atol=5e-2, rtol=3e-2), "bf16 mismatch vs reference"

    print("KERNEL_OK")
</pallas_src>

<mosaic_0001>
module attributes {stable_mosaic.version = 11 : i64} {
  func.func @_resnet_block_kernel(%arg0: i32, %arg1: memref<1x4x256xf32, #tpu.memory_space<vmem>>, %arg2: memref<4x256xi32, #tpu.memory_space<vmem>>, %arg3: memref<9x4x4xf32, #tpu.memory_space<vmem>>, %arg4: memref<4x1xf32, #tpu.memory_space<vmem>>, %arg5: memref<9x4x4xf32, #tpu.memory_space<vmem>>, %arg6: memref<4x1xf32, #tpu.memory_space<vmem>>, %arg7: memref<1x4x256xf32, #tpu.memory_space<vmem>>) attributes {dimension_semantics = [#tpu.dimension_semantics<parallel>], iteration_bounds = array<i64: 2>, scalar_prefetch = 0 : i64, scratch_operands = 0 : i64, tpu.core_type = #tpu.core_type<tc>, window_params = [{transform_indices = @transform_0, window_bounds = array<i64: 1, 4, 256>}, {pipeline_mode = #tpu.pipeline_mode<synchronous>, transform_indices = @transform_1, window_bounds = array<i64: 4, 256>}, {pipeline_mode = #tpu.pipeline_mode<synchronous>, transform_indices = @transform_2, window_bounds = array<i64: 9, 4, 4>}, {pipeline_mode = #tpu.pipeline_mode<synchronous>, transform_indices = @transform_3, window_bounds = array<i64: 4, 1>}, {pipeline_mode = #tpu.pipeline_mode<synchronous>, transform_indices = @transform_4, window_bounds = array<i64: 9, 4, 4>}, {pipeline_mode = #tpu.pipeline_mode<synchronous>, transform_indices = @transform_5, window_bounds = array<i64: 4, 1>}, {transform_indices = @transform_6, window_bounds = array<i64: 1, 4, 256>}]} {
    %c0 = arith.constant 0 : index
    %c0_0 = arith.constant 0 : index
    %c0_1 = arith.constant 0 : index
    %0 = vector.load %arg1[%c0, %c0_0, %c0_1] : memref<1x4x256xf32, #tpu.memory_space<vmem>>, vector<1x4x256xf32>
    %1 = vector.shape_cast %0 : vector<1x4x256xf32> to vector<4x256xf32>
    %c0_2 = arith.constant 0 : index
    %c0_3 = arith.constant 0 : index
    %2 = vector.load %arg2[%c0_2, %c0_3] : memref<4x256xi32, #tpu.memory_space<vmem>>, vector<1x256xi32>
    %c0_i32 = arith.constant 0 : i32
    %3 = vector.broadcast %c0_i32 : i32 to vector<1x256xi32>
    %4 = arith.cmpi ne, %2, %3 : vector<1x256xi32>
    %c1 = arith.constant 1 : index
    %c0_4 = arith.constant 0 : index
    %5 = vector.load %arg2[%c1, %c0_4] : memref<4x256xi32, #tpu.memory_space<vmem>>, vector<1x256xi32>
    %c0_i32_5 = arith.constant 0 : i32
    %6 = vector.broadcast %c0_i32_5 : i32 to vector<1x256xi32>
    %7 = arith.cmpi ne, %5, %6 : vector<1x256xi32>
    %c2 = arith.constant 2 : index
    %c0_6 = arith.constant 0 : index
    %8 = vector.load %arg2[%c2, %c0_6] : memref<4x256xi32, #tpu.memory_space<vmem>>, vector<1x256xi32>
    %c0_i32_7 = arith.constant 0 : i32
    %9 = vector.broadcast %c0_i32_7 : i32 to vector<1x256xi32>
    %10 = arith.cmpi ne, %8, %9 : vector<1x256xi32>
    %c3 = arith.constant 3 : index
    %c0_8 = arith.constant 0 : index
    %11 = vector.load %arg2[%c3, %c0_8] : memref<4x256xi32, #tpu.memory_space<vmem>>, vector<1x256xi32>
    %c0_i32_9 = arith.constant 0 : i32
    %12 = vector.broadcast %c0_i32_9 : i32 to vector<1x256xi32>
    %13 = arith.cmpi ne, %11, %12 : vector<1x256xi32>
    %c0_10 = arith.constant 0 : index
    %c0_11 = arith.constant 0 : index
    %14 = vector.load %arg4[%c0_10, %c0_11] : memref<4x1xf32, #tpu.memory_space<vmem>>, vector<4x1xf32>
    %15 = vector.shape_cast %14 : vector<4x1xf32> to vector<4x1xf32>
    %16 = vector.broadcast %15 : vector<4x1xf32> to vector<4x256xf32>
    %c255_i32 = arith.constant 255 : i32
    %17 = tpu.dynamic_rotate %1 by %c255_i32 dim 1 : vector<4x256xf32>, i32 -> vector<4x256xf32>
    %c1_i32 = arith.constant 1 : i32
    %18 = tpu.dynamic_rotate %1 by %c1_i32 dim 1 : vector<4x256xf32>, i32 -> vector<4x256xf32>
    %19 = vector.shape_cast %4 : vector<1x256xi1> to vector<1x256xi1>
    %20 = vector.broadcast %19 : vector<1x256xi1> to vector<4x256xi1>
    %21 = arith.select %20, %17, %18 : vector<4x256xi1>, vector<4x256xf32>
    %22 = vector.shape_cast %7 : vector<1x256xi1> to vector<1x256xi1>
    %23 = vector.broadcast %22 : vector<1x256xi1> to vector<4x256xi1>
    %24 = arith.select %23, %18, %17 : vector<4x256xi1>, vector<4x256xf32>
    %c240_i32 = arith.constant 240 : i32
    %25 = tpu.dynamic_rotate %21 by %c240_i32 dim 1 : vector<4x256xf32>, i32 -> vector<4x256xf32>
    %c16_i32 = arith.constant 16 : i32
    %26 = tpu.dynamic_rotate %21 by %c16_i32 dim 1 : vector<4x256xf32>, i32 -> vector<4x256xf32>
    %27 = vector.shape_cast %10 : vector<1x256xi1> to vector<1x256xi1>
    %28 = vector.broadcast %27 : vector<1x256xi1> to vector<4x256xi1>
    %29 = arith.select %28, %25, %26 : vector<4x256xi1>, vector<4x256xf32>
    %30 = vector.shape_cast %13 : vector<1x256xi1> to vector<1x256xi1>
    %31 = vector.broadcast %30 : vector<1x256xi1> to vector<4x256xi1>
    %32 = arith.select %31, %26, %25 : vector<4x256xi1>, vector<4x256xf32>
    %c240_i32_12 = arith.constant 240 : i32
    %33 = tpu.dynamic_rotate %1 by %c240_i32_12 dim 1 : vector<4x256xf32>, i32 -> vector<4x256xf32>
    %c16_i32_13 = arith.constant 16 : i32
    %34 = tpu.dynamic_rotate %1 by %c16_i32_13 dim 1 : vector<4x256xf32>, i32 -> vector<4x256xf32>
    %35 = vector.shape_cast %10 : vector<1x256xi1> to vector<1x256xi1>
    %36 = vector.broadcast %35 : vector<1x256xi1> to vector<4x256xi1>
    %37 = arith.select %36, %33, %34 : vector<4x256xi1>, vector<4x256xf32>
    %38 = vector.shape_cast %13 : vector<1x256xi1> to vector<1x256xi1>
    %39 = vector.broadcast %38 : vector<1x256xi1> to vector<4x256xi1>
    %40 = arith.select %39, %34, %33 : vector<4x256xi1>, vector<4x256xf32>
    %c240_i32_14 = arith.constant 240 : i32
    %41 = tpu.dynamic_rotate %24 by %c240_i32_14 dim 1 : vector<4x256xf32>, i32 -> vector<4x256xf32>
    %c16_i32_15 = arith.constant 16 : i32
    %42 = tpu.dynamic_rotate %24 by %c16_i32_15 dim 1 : vector<4x256xf32>, i32 -> vector<4x256xf32>
    %43 = vector.shape_cast %10 : vector<1x256xi1> to vector<1x256xi1>
    %44 = vector.broadcast %43 : vector<1x256xi1> to vector<4x256xi1>
    %45 = arith.select %44, %41, %42 : vector<4x256xi1>, vector<4x256xf32>
    %46 = vector.shape_cast %13 : vector<1x256xi1> to vector<1x256xi1>
    %47 = vector.broadcast %46 : vector<1x256xi1> to vector<4x256xi1>
    %48 = arith.select %47, %42, %41 : vector<4x256xi1>, vector<4x256xf32>
    %c0_16 = arith.constant 0 : index
    %c0_17 = arith.constant 0 : index
    %c0_18 = arith.constant 0 : index
    %49 = vector.load %arg3[%c0_16, %c0_17, %c0_18] : memref<9x4x4xf32, #tpu.memory_space<vmem>>, vector<1x4x4xf32>
    %50 = vector.shape_cast %49 : vector<1x4x4xf32> to vector<4x4xf32>
    %cst = arith.constant dense<0.000000e+00> : vector<4x256xf32>
    %51 = tpu.matmul %50, %29, %cst {dimension_numbers = #tpu.dot_dimension_numbers<[1], [0], [0], [1], [0, 0, 1, 1], [], []>} : vector<4x4xf32>, vector<4x256xf32>, vector<4x256xf32> -> vector<4x256xf32>
    %52 = arith.addf %16, %51 : vector<4x256xf32>
    %c1_19 = arith.constant 1 : index
    %c0_20 = arith.constant 0 : index
    %c0_21 = arith.constant 0 : index
    %53 = vector.load %arg3[%c1_19, %c0_20, %c0_21] : memref<9x4x4xf32, #tpu.memory_space<vmem>>, vector<1x4x4xf32>
    %54 = vector.shape_cast %53 : vector<1x4x4xf32> to vector<4x4xf32>
    %cst_22 = arith.constant dense<0.000000e+00> : vector<4x256xf32>
    %55 = tpu.matmul %54, %37, %cst_22 {dimension_numbers = #tpu.dot_dimension_numbers<[1], [0], [0], [1], [0, 0, 1, 1], [], []>} : vector<4x4xf32>, vector<4x256xf32>, vector<4x256xf32> -> vector<4x256xf32>
    %56 = arith.addf %52, %55 : vector<4x256xf32>
    %c2_23 = arith.constant 2 : index
    %c0_24 = arith.constant 0 : index
    %c0_25 = arith.constant 0 : index
    %57 = vector.load %arg3[%c2_23, %c0_24, %c0_25] : memref<9x4x4xf32, #tpu.memory_space<vmem>>, vector<1x4x4xf32>
    %58 = vector.shape_cast %57 : vector<1x4x4xf32> to vector<4x4xf32>
    %cst_26 = arith.constant dense<0.000000e+00> : vector<4x256xf32>
    %59 = tpu.matmul %58, %45, %cst_26 {dimension_numbers = #tpu.dot_dimension_numbers<[1], [0], [0], [1], [0, 0, 1, 1], [], []>} : vector<4x4xf32>, vector<4x256xf32>, vector<4x256xf32> -> vector<4x256xf32>
    %60 = arith.addf %56, %59 : vector<4x256xf32>
    %c3_27 = arith.constant 3 : index
    %c0_28 = arith.constant 0 : index
    %c0_29 = arith.constant 0 : index
    %61 = vector.load %arg3[%c3_27, %c0_28, %c0_29] : memref<9x4x4xf32, #tpu.memory_space<vmem>>, vector<1x4x4xf32>
    %62 = vector.shape_cast %61 : vector<1x4x4xf32> to vector<4x4xf32>
    %cst_30 = arith.constant dense<0.000000e+00> : vector<4x256xf32>
    %63 = tpu.matmul %62, %21, %cst_30 {dimension_numbers = #tpu.dot_dimension_numbers<[1], [0], [0], [1], [0, 0, 1, 1], [], []>} : vector<4x4xf32>, vector<4x256xf32>, vector<4x256xf32> -> vector<4x256xf32>
    %64 = arith.addf %60, %63 : vector<4x256xf32>
    %c4 = arith.constant 4 : index
    %c0_31 = arith.constant 0 : index
    %c0_32 = arith.constant 0 : index
    %65 = vector.load %arg3[%c4, %c0_31, %c0_32] : memref<9x4x4xf32, #tpu.memory_space<vmem>>, vector<1x4x4xf32>
    %66 = vector.shape_cast %65 : vector<1x4x4xf32> to vector<4x4xf32>
    %cst_33 = arith.constant dense<0.000000e+00> : vector<4x256xf32>
    %67 = tpu.matmul %66, %1, %cst_33 {dimension_numbers = #tpu.dot_dimension_numbers<[1], [0], [0], [1], [0, 0, 1, 1], [], []>} : vector<4x4xf32>, vector<4x256xf32>, vector<4x256xf32> -> vector<4x256xf32>
    %68 = arith.addf %64, %67 : vector<4x256xf32>
    %c5 = arith.constant 5 : index
    %c0_34 = arith.constant 0 : index
    %c0_35 = arith.constant 0 : index
    %69 = vector.load %arg3[%c5, %c0_34, %c0_35] : memref<9x4x4xf32, #tpu.memory_space<vmem>>, vector<1x4x4xf32>
    %70 = vector.shape_cast %69 : vector<1x4x4xf32> to vector<4x4xf32>
    %cst_36 = arith.constant dense<0.000000e+00> : vector<4x256xf32>
    %71 = tpu.matmul %70, %24, %cst_36 {dimension_numbers = #tpu.dot_dimension_numbers<[1], [0], [0], [1], [0, 0, 1, 1], [], []>} : vector<4x4xf32>, vector<4x256xf32>, vector<4x256xf32> -> vector<4x256xf32>
    %72 = arith.addf %68, %71 : vector<4x256xf32>
    %c6 = arith.constant 6 : index
    %c0_37 = arith.constant 0 : index
    %c0_38 = arith.constant 0 : index
    %73 = vector.load %arg3[%c6, %c0_37, %c0_38] : memref<9x4x4xf32, #tpu.memory_space<vmem>>, vector<1x4x4xf32>
    %74 = vector.shape_cast %73 : vector<1x4x4xf32> to vector<4x4xf32>
    %cst_39 = arith.constant dense<0.000000e+00> : vector<4x256xf32>
    %75 = tpu.matmul %74, %32, %cst_39 {dimension_numbers = #tpu.dot_dimension_numbers<[1], [0], [0], [1], [0, 0, 1, 1], [], []>} : vector<4x4xf32>, vector<4x256xf32>, vector<4x256xf32> -> vector<4x256xf32>
    %76 = arith.addf %72, %75 : vector<4x256xf32>
    %c7 = arith.constant 7 : index
    %c0_40 = arith.constant 0 : index
    %c0_41 = arith.constant 0 : index
    %77 = vector.load %arg3[%c7, %c0_40, %c0_41] : memref<9x4x4xf32, #tpu.memory_space<vmem>>, vector<1x4x4xf32>
    %78 = vector.shape_cast %77 : vector<1x4x4xf32> to vector<4x4xf32>
    %cst_42 = arith.constant dense<0.000000e+00> : vector<4x256xf32>
    %79 = tpu.matmul %78, %40, %cst_42 {dimension_numbers = #tpu.dot_dimension_numbers<[1], [0], [0], [1], [0, 0, 1, 1], [], []>} : vector<4x4xf32>, vector<4x256xf32>, vector<4x256xf32> -> vector<4x256xf32>
    %80 = arith.addf %76, %79 : vector<4x256xf32>
    %c8 = arith.constant 8 : index
    %c0_43 = arith.constant 0 : index
    %c0_44 = arith.constant 0 : index
    %81 = vector.load %arg3[%c8, %c0_43, %c0_44] : memref<9x4x4xf32, #tpu.memory_space<vmem>>, vector<1x4x4xf32>
    %82 = vector.shape_cast %81 : vector<1x4x4xf32> to vector<4x4xf32>
    %cst_45 = arith.constant dense<0.000000e+00> : vector<4x256xf32>
    %83 = tpu.matmul %82, %48, %cst_45 {dimension_numbers = #tpu.dot_dimension_numbers<[1], [0], [0], [1], [0, 0, 1, 1], [], []>} : vector<4x4xf32>, vector<4x256xf32>, vector<4x256xf32> -> vector<4x256xf32>
    %84 = arith.addf %80, %83 : vector<4x256xf32>
    %cst_46 = arith.constant 0.000000e+00 : f32
    %85 = vector.broadcast %cst_46 : f32 to vector<4x256xf32>
    %86 = arith.maximumf %84, %85 : vector<4x256xf32>
    %c0_47 = arith.constant 0 : index
    %c0_48 = arith.constant 0 : index
    %87 = vector.load %arg6[%c0_47, %c0_48] : memref<4x1xf32, #tpu.memory_space<vmem>>, vector<4x1xf32>
    %88 = vector.shape_cast %87 : vector<4x1xf32> to vector<4x1xf32>
    %89 = vector.broadcast %88 : vector<4x1xf32> to vector<4x256xf32>
    %c255_i32_49 = arith.constant 255 : i32
    %90 = tpu.dynamic_rotate %86 by %c255_i32_49 dim 1 : vector<4x256xf32>, i32 -> vector<4x256xf32>
    %c1_i32_50 = arith.constant 1 : i32
    %91 = tpu.dynamic_rotate %86 by %c1_i32_50 dim 1 : vector<4x256xf32>, i32 -> vector<4x256xf32>
    %92 = vector.shape_cast %4 : vector<1x256xi1> to vector<1x256xi1>
    %93 = vector.broadcast %92 : vector<1x256xi1> to vector<4x256xi1>
    %94 = arith.select %93, %90, %91 : vector<4x256xi1>, vector<4x256xf32>
    %95 = vector.shape_cast %7 : vector<1x256xi1> to vector<1x256xi1>
    %96 = vector.broadcast %95 : vector<1x256xi1> to vector<4x256xi1>
    %97 = arith.select %96, %91, %90 : vector<4x256xi1>, vector<4x256xf32>
    %c240_i32_51 = arith.constant 240 : i32
    %98 = tpu.dynamic_rotate %94 by %c240_i32_51 dim 1 : vector<4x256xf32>, i32 -> vector<4x256xf32>
    %c16_i32_52 = arith.constant 16 : i32
    %99 = tpu.dynamic_rotate %94 by %c16_i32_52 dim 1 : vector<4x256xf32>, i32 -> vector<4x256xf32>
    %100 = vector.shape_cast %10 : vector<1x256xi1> to vector<1x256xi1>
    %101 = vector.broadcast %100 : vector<1x256xi1> to vector<4x256xi1>
    %102 = arith.select %101, %98, %99 : vector<4x256xi1>, vector<4x256xf32>
    %103 = vector.shape_cast %13 : vector<1x256xi1> to vector<1x256xi1>
    %104 = vector.broadcast %103 : vector<1x256xi1> to vector<4x256xi1>
    %105 = arith.select %104, %99, %98 : vector<4x256xi1>, vector<4x256xf32>
    %c240_i32_53 = arith.constant 240 : i32
    %106 = tpu.dynamic_rotate %86 by %c240_i32_53 dim 1 : vector<4x256xf32>, i32 -> vector<4x256xf32>
    %c16_i32_54 = arith.constant 16 : i32
    %107 = tpu.dynamic_rotate %86 by %c16_i32_54 dim 1 : vector<4x256xf32>, i32 -> vector<4x256xf32>
    %108 = vector.shape_cast %10 : vector<1x256xi1> to vector<1x256xi1>
    %109 = vector.broadcast %108 : vector<1x256xi1> to vector<4x256xi1>
    %110 = arith.select %109, %106, %107 : vector<4x256xi1>, vector<4x256xf32>
    %111 = vector.shape_cast %13 : vector<1x256xi1> to vector<1x256xi1>
    %112 = vector.broadcast %111 : vector<1x256xi1> to vector<4x256xi1>
    %113 = arith.select %112, %107, %106 : vector<4x256xi1>, vector<4x256xf32>
    %c240_i32_55 = arith.constant 240 : i32
    %114 = tpu.dynamic_rotate %97 by %c240_i32_55 dim 1 : vector<4x256xf32>, i32 -> vector<4x256xf32>
    %c16_i32_56 = arith.constant 16 : i32
    %115 = tpu.dynamic_rotate %97 by %c16_i32_56 dim 1 : vector<4x256xf32>, i32 -> vector<4x256xf32>
    %116 = vector.shape_cast %10 : vector<1x256xi1> to vector<1x256xi1>
    %117 = vector.broadcast %116 : vector<1x256xi1> to vector<4x256xi1>
    %118 = arith.select %117, %114, %115 : vector<4x256xi1>, vector<4x256xf32>
    %119 = vector.shape_cast %13 : vector<1x256xi1> to vector<1x256xi1>
    %120 = vector.broadcast %119 : vector<1x256xi1> to vector<4x256xi1>
    %121 = arith.select %120, %115, %114 : vector<4x256xi1>, vector<4x256xf32>
    %c0_57 = arith.constant 0 : index
    %c0_58 = arith.constant 0 : index
    %c0_59 = arith.constant 0 : index
    %122 = vector.load %arg5[%c0_57, %c0_58, %c0_59] : memref<9x4x4xf32, #tpu.memory_space<vmem>>, vector<1x4x4xf32>
    %123 = vector.shape_cast %122 : vector<1x4x4xf32> to vector<4x4xf32>
    %cst_60 = arith.constant dense<0.000000e+00> : vector<4x256xf32>
    %124 = tpu.matmul %123, %102, %cst_60 {dimension_numbers = #tpu.dot_dimension_numbers<[1], [0], [0], [1], [0, 0, 1, 1], [], []>} : vector<4x4xf32>, vector<4x256xf32>, vector<4x256xf32> -> vector<4x256xf32>
    %125 = arith.addf %89, %124 : vector<4x256xf32>
    %c1_61 = arith.constant 1 : index
    %c0_62 = arith.constant 0 : index
    %c0_63 = arith.constant 0 : index
    %126 = vector.load %arg5[%c1_61, %c0_62, %c0_63] : memref<9x4x4xf32, #tpu.memory_space<vmem>>, vector<1x4x4xf32>
    %127 = vector.shape_cast %126 : vector<1x4x4xf32> to vector<4x4xf32>
    %cst_64 = arith.constant dense<0.000000e+00> : vector<4x256xf32>
    %128 = tpu.matmul %127, %110, %cst_64 {dimension_numbers = #tpu.dot_dimension_numbers<[1], [0], [0], [1], [0, 0, 1, 1], [], []>} : vector<4x4xf32>, vector<4x256xf32>, vector<4x256xf32> -> vector<4x256xf32>
    %129 = arith.addf %125, %128 : vector<4x256xf32>
    %c2_65 = arith.constant 2 : index
    %c0_66 = arith.constant 0 : index
    %c0_67 = arith.constant 0 : index
    %130 = vector.load %arg5[%c2_65, %c0_66, %c0_67] : memref<9x4x4xf32, #tpu.memory_space<vmem>>, vector<1x4x4xf32>
    %131 = vector.shape_cast %130 : vector<1x4x4xf32> to vector<4x4xf32>
    %cst_68 = arith.constant dense<0.000000e+00> : vector<4x256xf32>
    %132 = tpu.matmul %131, %118, %cst_68 {dimension_numbers = #tpu.dot_dimension_numbers<[1], [0], [0], [1], [0, 0, 1, 1], [], []>} : vector<4x4xf32>, vector<4x256xf32>, vector<4x256xf32> -> vector<4x256xf32>
    %133 = arith.addf %129, %132 : vector<4x256xf32>
    %c3_69 = arith.constant 3 : index
    %c0_70 = arith.constant 0 : index
    %c0_71 = arith.constant 0 : index
    %134 = vector.load %arg5[%c3_69, %c0_70, %c0_71] : memref<9x4x4xf32, #tpu.memory_space<vmem>>, vector<1x4x4xf32>
    %135 = vector.shape_cast %134 : vector<1x4x4xf32> to vector<4x4xf32>
    %cst_72 = arith.constant dense<0.000000e+00> : vector<4x256xf32>
    %136 = tpu.matmul %135, %94, %cst_72 {dimension_numbers = #tpu.dot_dimension_numbers<[1], [0], [0], [1], [0, 0, 1, 1], [], []>} : vector<4x4xf32>, vector<4x256xf32>, vector<4x256xf32> -> vector<4x256xf32>
    %137 = arith.addf %133, %136 : vector<4x256xf32>
    %c4_73 = arith.constant 4 : index
    %c0_74 = arith.constant 0 : index
    %c0_75 = arith.constant 0 : index
    %138 = vector.load %arg5[%c4_73, %c0_74, %c0_75] : memref<9x4x4xf32, #tpu.memory_space<vmem>>, vector<1x4x4xf32>
    %139 = vector.shape_cast %138 : vector<1x4x4xf32> to vector<4x4xf32>
    %cst_76 = arith.constant dense<0.000000e+00> : vector<4x256xf32>
    %140 = tpu.matmul %139, %86, %cst_76 {dimension_numbers = #tpu.dot_dimension_numbers<[1], [0], [0], [1], [0, 0, 1, 1], [], []>} : vector<4x4xf32>, vector<4x256xf32>, vector<4x256xf32> -> vector<4x256xf32>
    %141 = arith.addf %137, %140 : vector<4x256xf32>
    %c5_77 = arith.constant 5 : index
    %c0_78 = arith.constant 0 : index
    %c0_79 = arith.constant 0 : index
    %142 = vector.load %arg5[%c5_77, %c0_78, %c0_79] : memref<9x4x4xf32, #tpu.memory_space<vmem>>, vector<1x4x4xf32>
    %143 = vector.shape_cast %142 : vector<1x4x4xf32> to vector<4x4xf32>
    %cst_80 = arith.constant dense<0.000000e+00> : vector<4x256xf32>
    %144 = tpu.matmul %143, %97, %cst_80 {dimension_numbers = #tpu.dot_dimension_numbers<[1], [0], [0], [1], [0, 0, 1, 1], [], []>} : vector<4x4xf32>, vector<4x256xf32>, vector<4x256xf32> -> vector<4x256xf32>
    %145 = arith.addf %141, %144 : vector<4x256xf32>
    %c6_81 = arith.constant 6 : index
    %c0_82 = arith.constant 0 : index
    %c0_83 = arith.constant 0 : index
    %146 = vector.load %arg5[%c6_81, %c0_82, %c0_83] : memref<9x4x4xf32, #tpu.memory_space<vmem>>, vector<1x4x4xf32>
    %147 = vector.shape_cast %146 : vector<1x4x4xf32> to vector<4x4xf32>
    %cst_84 = arith.constant dense<0.000000e+00> : vector<4x256xf32>
    %148 = tpu.matmul %147, %105, %cst_84 {dimension_numbers = #tpu.dot_dimension_numbers<[1], [0], [0], [1], [0, 0, 1, 1], [], []>} : vector<4x4xf32>, vector<4x256xf32>, vector<4x256xf32> -> vector<4x256xf32>
    %149 = arith.addf %145, %148 : vector<4x256xf32>
    %c7_85 = arith.constant 7 : index
    %c0_86 = arith.constant 0 : index
    %c0_87 = arith.constant 0 : index
    %150 = vector.load %arg5[%c7_85, %c0_86, %c0_87] : memref<9x4x4xf32, #tpu.memory_space<vmem>>, vector<1x4x4xf32>
    %151 = vector.shape_cast %150 : vector<1x4x4xf32> to vector<4x4xf32>
    %cst_88 = arith.constant dense<0.000000e+00> : vector<4x256xf32>
    %152 = tpu.matmul %151, %113, %cst_88 {dimension_numbers = #tpu.dot_dimension_numbers<[1], [0], [0], [1], [0, 0, 1, 1], [], []>} : vector<4x4xf32>, vector<4x256xf32>, vector<4x256xf32> -> vector<4x256xf32>
    %153 = arith.addf %149, %152 : vector<4x256xf32>
    %c8_89 = arith.constant 8 : index
    %c0_90 = arith.constant 0 : index
    %c0_91 = arith.constant 0 : index
    %154 = vector.load %arg5[%c8_89, %c0_90, %c0_91] : memref<9x4x4xf32, #tpu.memory_space<vmem>>, vector<1x4x4xf32>
    %155 = vector.shape_cast %154 : vector<1x4x4xf32> to vector<4x4xf32>
    %cst_92 = arith.constant dense<0.000000e+00> : vector<4x256xf32>
    %156 = tpu.matmul %155, %121, %cst_92 {dimension_numbers = #tpu.dot_dimension_numbers<[1], [0], [0], [1], [0, 0, 1, 1], [], []>} : vector<4x4xf32>, vector<4x256xf32>, vector<4x256xf32> -> vector<4x256xf32>
    %157 = arith.addf %153, %156 : vector<4x256xf32>
    %158 = arith.addf %1, %157 : vector<4x256xf32>
    %159 = vector.shape_cast %158 : vector<4x256xf32> to vector<1x4x256xf32>
    %c0_93 = arith.constant 0 : index
    %c0_94 = arith.constant 0 : index
    %c0_95 = arith.constant 0 : index
    %160 = vector.load %arg7[%c0_93, %c0_94, %c0_95] : memref<1x4x256xf32, #tpu.memory_space<vmem>>, vector<1x4x256xf32>
    tpu.vector_store %arg7[%c0_93, %c0_94, %c0_95], %159 {strides = array<i32>} : memref<1x4x256xf32, #tpu.memory_space<vmem>>, vector<1x4x256xf32>,
    return
  }
  func.func @transform_0(%arg0: i32) -> (i32, i32, i32) {
    %c0_i32 = arith.constant 0 : i32
    %c0_i32_0 = arith.constant 0 : i32
    %c0_i32_1 = arith.constant 0 : i32
    return %arg0, %c0_i32, %c0_i32_0 : i32, i32, i32
  }
  func.func @transform_1(%arg0: i32) -> (i32, i32) {
    %c0_i32 = arith.constant 0 : i32
    %c0_i32_0 = arith.constant 0 : i32
    %c0_i32_1 = arith.constant 0 : i32
    return %c0_i32, %c0_i32_0 : i32, i32
  }
  func.func @transform_2(%arg0: i32) -> (i32, i32, i32) {
    %c0_i32 = arith.constant 0 : i32
    %c0_i32_0 = arith.constant 0 : i32
    %c0_i32_1 = arith.constant 0 : i32
    %c0_i32_2 = arith.constant 0 : i32
    return %c0_i32, %c0_i32_0, %c0_i32_1 : i32, i32, i32
  }
  func.func @transform_3(%arg0: i32) -> (i32, i32) {
    %c0_i32 = arith.constant 0 : i32
    %c0_i32_0 = arith.constant 0 : i32
    %c0_i32_1 = arith.constant 0 : i32
    return %c0_i32, %c0_i32_0 : i32, i32
  }
  func.func @transform_4(%arg0: i32) -> (i32, i32, i32) {
    %c0_i32 = arith.constant 0 : i32
    %c0_i32_0 = arith.constant 0 : i32
    %c0_i32_1 = arith.constant 0 : i32
    %c0_i32_2 = arith.constant 0 : i32
    return %c0_i32, %c0_i32_0, %c0_i32_1 : i32, i32, i32
  }
  func.func @transform_5(%arg0: i32) -> (i32, i32) {
    %c0_i32 = arith.constant 0 : i32
    %c0_i32_0 = arith.constant 0 : i32
    %c0_i32_1 = arith.constant 0 : i32
    return %c0_i32, %c0_i32_0 : i32, i32
  }
  func.func @transform_6(%arg0: i32) -> (i32, i32, i32) {
    %c0_i32 = arith.constant 0 : i32
    %c0_i32_0 = arith.constant 0 : i32
    %c0_i32_1 = arith.constant 0 : i32
    return %arg0, %c0_i32, %c0_i32_0 : i32, i32, i32
  }
}

</mosaic_0001>

<llo_original>
// kernel: tpu_custom_call.1
$region0: #{tpu_custom_call.1}
  #allocation0 [shape = 'u32[]', space=smem, size = 0x4, offset = 0x4, fixed_abs, tag = 'smem constant byte address 0x4 - core index']
  #allocation1 [shape = 'u32[144,128]{1,0:T(1,128)}', space=vmem, size = 0x12000, scoped, tag = 'internal scratch']
  %s0 = inlined_call_operand.vmem [shape: f32[2,4,256], index: 0, kind: input, shape index: {}]
  %s1 = inlined_call_operand.vmem [shape: s32[4,256], index: 1, kind: input, shape index: {}]
  %s2 = inlined_call_operand.vmem [shape: f32[9,4,4], index: 2, kind: input, shape index: {}]
  %s3 = inlined_call_operand.vmem [shape: f32[4,1], index: 3, kind: input, shape index: {}]
  %s4 = inlined_call_operand.vmem [shape: f32[9,4,4], index: 4, kind: input, shape index: {}]
  %s5 = inlined_call_operand.vmem [shape: f32[4,1], index: 5, kind: input, shape index: {}]
  %s6 = inlined_call_operand.hbm [shape: f32[2,4,256], index: 6, kind: output, shape index: {}]
  %s7 = sld [smem:[#allocation0]]
  $region57: #{tpu_custom_call.1} parent=0
    _
  %s9 = ssub.s32 1, %s7
  %s10 = scalar_select 0, %s9, %s7
  $region1: #{tpu_custom_call.1} parent=0
    #allocation2 [shape = 'u8[8192]{0}', space=vmem, size = 0x2000, scoped, tag = 'output window, operand 0']
    #allocation3 [shape = 's32[2]{0}', space=sflag, size = 0x8, scoped, tag = 'scoped memory for tpu_custom_call.1']
    %11 = vsyncpa [#allocation3], 0
    %s12 = scalar_lea.sflag [#allocation3], 1
    %13 = vsyncpa %s12, 0
    loop: start=0, step=1, limit=4
    $region2: #{tpu_custom_call.1} parent=1 // loop_pre_header
      _
    $region3: #{tpu_custom_call.1} parent=1 // loop_header
      %s15 = sphi 0, %s19
      %p16 = scmp.ge.s32.totalorder %s15, 4
      %s25 = sphi 0, %s27
      %s28 = sphi 0, %s25
      %s29 = sphi 0, %s28
      %s45 = sphi 0, %s29
      %s49 = sphi 0, %s49
      %s51 = sphi 0, %s49
      %s52 = sphi 0, %s51
      %s66 = sphi 0, %s52
      %s70 = sphi 0, %s70
      %s72 = sphi 0, %s70
      %s73 = sphi 0, %s72
      %s87 = sphi 0, %s73
      %s91 = sphi 0, %s91
      %s93 = sphi 0, %s91
      %s94 = sphi 0, %s93
      %s108 = sphi 0, %s94
      %s112 = sphi 0, %s112
      %s114 = sphi 0, %s112
      %s115 = sphi 0, %s114
      %s129 = sphi 0, %s115
      %s133 = sphi 0, %s133
      %s135 = sphi 0, %s133
      %s136 = sphi 0, %s135
      %s150 = sphi 0, %s136
      %s156 = sphi 0, %s158
      %s159 = sphi 0, %s156
      %s160 = sphi 0, %s159
      %s176 = sphi 0, %s160
    $region4: #{tpu_custom_call.1} parent=1 // loop_header_branch
      %18 = sbr.rel (%p16) target = $region8
    $region5: #{tpu_custom_call.1} parent=1 // loop_body
      %s20 = ssub.s32 %s15, 1
      %s21 = ssub.s32 %s15, 2
      %s22 = sadd.s32 %s15, 1
      %s23 = ssub.s32 %s15, %s22
      %p24 = scmp.eq.s32.totalorder %s23, 0
      %s26 = sadd.s32 %s25, 1
      %s27 = scalar_select %p24, %s25, %s26
      %p30 = pneg %p24
      %p31 = scmp.eq.s32.totalorder %s15, 1
      %p32 = por %p30, %p31
      %p33 = scmp.ne.s32.totalorder %s25, %s28
      %p34 = scmp.eq.s32.totalorder %s15, 0
      %p35 = por %p33, %p34
      %p36 = scmp.ne.s32.totalorder %s25, %s28
      %p37 = scmp.eq.s32.totalorder %s20, 1
      %p38 = por %p36, %p37
      %p39 = scmp.ne.s32.totalorder %s28, %s29
      %p40 = scmp.eq.s32.totalorder %s20, 0
      %p41 = por %p39, %p40
      %p42 = scmp.ne.s32.totalorder %s28, %s29
      %p43 = scmp.eq.s32.totalorder %s21, 1
      %p44 = por %p42, %p43
      %p46 = scmp.ne.s32.totalorder %s29, %s45
      %p47 = scmp.eq.s32.totalorder %s21, 0
      %p48 = por %p46, %p47
      %s50 = sadd.s32 %s49, 1
      %p53 = scmp.eq.s32.totalorder %s15, 1
      %p54 = scmp.ne.s32.totalorder %s49, %s51
      %p55 = scmp.eq.s32.totalorder %s15, 0
      %p56 = por %p54, %p55
      %p57 = scmp.ne.s32.totalorder %s49, %s51
      %p58 = scmp.eq.s32.totalorder %s20, 1
      %p59 = por %p57, %p58
      %p60 = scmp.ne.s32.totalorder %s51, %s52
      %p61 = scmp.eq.s32.totalorder %s20, 0
      %p62 = por %p60, %p61
      %p63 = scmp.ne.s32.totalorder %s51, %s52
      %p64 = scmp.eq.s32.totalorder %s21, 1
      %p65 = por %p63, %p64
      %p67 = scmp.ne.s32.totalorder %s52, %s66
      %p68 = scmp.eq.s32.totalorder %s21, 0
      %p69 = por %p67, %p68
      %s71 = sadd.s32 %s70, 1
      %p74 = scmp.eq.s32.totalorder %s15, 1
      %p75 = scmp.ne.s32.totalorder %s70, %s72
      %p76 = scmp.eq.s32.totalorder %s15, 0
      %p77 = por %p75, %p76
      %p78 = scmp.ne.s32.totalorder %s70, %s72
      %p79 = scmp.eq.s32.totalorder %s20, 1
      %p80 = por %p78, %p79
      %p81 = scmp.ne.s32.totalorder %s72, %s73
      %p82 = scmp.eq.s32.totalorder %s20, 0
      %p83 = por %p81, %p82
      %p84 = scmp.ne.s32.totalorder %s72, %s73
      %p85 = scmp.eq.s32.totalorder %s21, 1
      %p86 = por %p84, %p85
      %p88 = scmp.ne.s32.totalorder %s73, %s87
      %p89 = scmp.eq.s32.totalorder %s21, 0
      %p90 = por %p88, %p89
      %s92 = sadd.s32 %s91, 1
      %p95 = scmp.eq.s32.totalorder %s15, 1
      %p96 = scmp.ne.s32.totalorder %s91, %s93
      %p97 = scmp.eq.s32.totalorder %s15, 0
      %p98 = por %p96, %p97
      %p99 = scmp.ne.s32.totalorder %s91, %s93
      %p100 = scmp.eq.s32.totalorder %s20, 1
      %p101 = por %p99, %p100
      %p102 = scmp.ne.s32.totalorder %s93, %s94
      %p103 = scmp.eq.s32.totalorder %s20, 0
      %p104 = por %p102, %p103
      %p105 = scmp.ne.s32.totalorder %s93, %s94
      %p106 = scmp.eq.s32.totalorder %s21, 1
      %p107 = por %p105, %p106
      %p109 = scmp.ne.s32.totalorder %s94, %s108
      %p110 = scmp.eq.s32.totalorder %s21, 0
      %p111 = por %p109, %p110
      %s113 = sadd.s32 %s112, 1
      %p116 = scmp.eq.s32.totalorder %s15, 1
      %p117 = scmp.ne.s32.totalorder %s112, %s114
      %p118 = scmp.eq.s32.totalorder %s15, 0
      %p119 = por %p117, %p118
      %p120 = scmp.ne.s32.totalorder %s112, %s114
      %p121 = scmp.eq.s32.totalorder %s20, 1
      %p122 = por %p120, %p121
      %p123 = scmp.ne.s32.totalorder %s114, %s115
      %p124 = scmp.eq.s32.totalorder %s20, 0
      %p125 = por %p123, %p124
      %p126 = scmp.ne.s32.totalorder %s114, %s115
      %p127 = scmp.eq.s32.totalorder %s21, 1
      %p128 = por %p126, %p127
      %p130 = scmp.ne.s32.totalorder %s115, %s129
      %p131 = scmp.eq.s32.totalorder %s21, 0
      %p132 = por %p130, %p131
      %s134 = sadd.s32 %s133, 1
      %p137 = scmp.eq.s32.totalorder %s15, 1
      %p138 = scmp.ne.s32.totalorder %s133, %s135
      %p139 = scmp.eq.s32.totalorder %s15, 0
      %p140 = por %p138, %p139
      %p141 = scmp.ne.s32.totalorder %s133, %s135
      %p142 = scmp.eq.s32.totalorder %s20, 1
      %p143 = por %p141, %p142
      %p144 = scmp.ne.s32.totalorder %s135, %s136
      %p145 = scmp.eq.s32.totalorder %s20, 0
      %p146 = por %p144, %p145
      %p147 = scmp.ne.s32.totalorder %s135, %s136
      %p148 = scmp.eq.s32.totalorder %s21, 1
      %p149 = por %p147, %p148
      %p151 = scmp.ne.s32.totalorder %s136, %s150
      %p152 = scmp.eq.s32.totalorder %s21, 0
      %p153 = por %p151, %p152
      %s154 = ssub.s32 %s15, %s22
      %p155 = scmp.eq.s32.totalorder %s154, 0
      %s157 = sadd.s32 %s156, 1
      %s158 = scalar_select %p155, %s156, %s157
      %p161 = pneg %p155
      %p162 = scmp.eq.s32.totalorder %s15, 1
      %p163 = por %p161, %p162
      %p164 = scmp.ne.s32.totalorder %s156, %s159
      %p165 = scmp.eq.s32.totalorder %s15, 0
      %p166 = por %p164, %p165
      %p167 = scmp.ne.s32.totalorder %s156, %s159
      %p168 = scmp.eq.s32.totalorder %s20, 1
      %p169 = por %p167, %p168
      %p170 = scmp.ne.s32.totalorder %s159, %s160
      %p171 = scmp.eq.s32.totalorder %s20, 0
      %p172 = por %p170, %p171
      %p173 = scmp.ne.s32.totalorder %s159, %s160
      %p174 = scmp.eq.s32.totalorder %s21, 1
      %p175 = por %p173, %p174
      %p177 = scmp.ne.s32.totalorder %s160, %s176
      %p178 = scmp.eq.s32.totalorder %s21, 0
      %p179 = por %p177, %p178
      %p180 = scmp.le.s32.totalorder 1, %s15
      %p181 = scmp.lt.s32.totalorder %s15, 3
      %p182 = pnand %p180, %p181
      %p183 = pneg %p182
      // Predicated region
      $region9: #{tpu_custom_call.1} parent=5 // pred_check
        _
      $region10: #{tpu_custom_call.1} parent=5 // pred_check_branch
        %185 = sbr.rel (%p182) target = $region12
      $region11: #{tpu_custom_call.1} parent=5 // pred_region
        %s186 = ssub.s32 %s15, 1
        // Predicated region
        $region13: #{tpu_custom_call.1} parent=11 // pred_check
          %p187 = pneg %p62
        $region14: #{tpu_custom_call.1} parent=11 // pred_check_branch
          %189 = sbr.rel (%p187) target = $region16
        $region15: #{tpu_custom_call.1} parent=11 // pred_region
          _
        $region16: #{tpu_custom_call.1} parent=11 // pred_fallthru
          _
        // Predicated region
        $region17: #{tpu_custom_call.1} parent=11 // pred_check
          %p190 = pneg %p83
        $region18: #{tpu_custom_call.1} parent=11 // pred_check_branch
          %192 = sbr.rel (%p190) target = $region20
        $region19: #{tpu_custom_call.1} parent=11 // pred_region
          _
        $region20: #{tpu_custom_call.1} parent=11 // pred_fallthru
          _
        // Predicated region
        $region21: #{tpu_custom_call.1} parent=11 // pred_check
          %p193 = pneg %p104
        $region22: #{tpu_custom_call.1} parent=11 // pred_check_branch
          %195 = sbr.rel (%p193) target = $region24
        $region23: #{tpu_custom_call.1} parent=11 // pred_region
          _
        $region24: #{tpu_custom_call.1} parent=11 // pred_fallthru
          _
        // Predicated region
        $region25: #{tpu_custom_call.1} parent=11 // pred_check
          %p196 = pneg %p125
        $region26: #{tpu_custom_call.1} parent=11 // pred_check_branch
          %198 = sbr.rel (%p196) target = $region28
        $region27: #{tpu_custom_call.1} parent=11 // pred_region
          _
        $region28: #{tpu_custom_call.1} parent=11 // pred_fallthru
          _
        // Predicated region
        $region29: #{tpu_custom_call.1} parent=11 // pred_check
          %p199 = pneg %p146
        $region30: #{tpu_custom_call.1} parent=11 // pred_check_branch
          %201 = sbr.rel (%p199) target = $region32
        $region31: #{tpu_custom_call.1} parent=11 // pred_region
          _
        $region32: #{tpu_custom_call.1} parent=11 // pred_fallthru
          _
      $region12: #{tpu_custom_call.1} parent=5 // pred_fallthru
        _
      %p202 = scmp.lt.s32.totalorder %s15, 2
      // Predicated region
      $region33: #{tpu_custom_call.1} parent=5 // pred_check
        %p203 = pneg %p202
      $region34: #{tpu_custom_call.1} parent=5 // pred_check_branch
        %205 = sbr.rel (%p203) target = $region36
      $region35: #{tpu_custom_call.1} parent=5 // pred_region
        // Predicated region
        $region37: #{tpu_custom_call.1} parent=35 // pred_check
          %p206 = pneg %p35
        $region38: #{tpu_custom_call.1} parent=35 // pred_check_branch
          %208 = sbr.rel (%p206) target = $region40
        $region39: #{tpu_custom_call.1} parent=35 // pred_region
          %p209 = scmp.lt.s32.totalorder %s15, 1
          %s210 = scalar_select %p209, %s15, 1
          %s211 = smul.addr %s210, 2
          %s212 = smul.addr %s211, 4
          %s213 = scalar_lea.vmem %s0, %s212
        $region40: #{tpu_custom_call.1} parent=35 // pred_fallthru
          _
      $region36: #{tpu_custom_call.1} parent=5 // pred_fallthru
        _
      %p214 = scmp.le.s32.totalorder 1, %s15
      %p215 = scmp.lt.s32.totalorder %s15, 3
      %p216 = pnand %p214, %p215
      %p217 = pneg %p216
      // Predicated region
      $region41: #{tpu_custom_call.1} parent=5 // pred_check
        _
      $region42: #{tpu_custom_call.1} parent=5 // pred_check_branch
        %219 = sbr.rel (%p216) target = $region44
      $region43: #{tpu_custom_call.1} parent=5 // pred_region
        %s220 = ssub.s32 %s15, 1
        %p221 = scmp.lt.s32.totalorder %s20, 1
        %s222 = scalar_select %p221, %s20, 1
        %s223 = smul.addr %s222, 2
        %s224 = smul.addr %s223, 4
        %s225 = scalar_lea.vmem %s0, %s224
        %p226 = pneg %p41
        %p227 = pneg %p38
        %p228 = pneg %p62
        %p229 = pneg %p59
        %p230 = pneg %p83
        %p231 = pneg %p80
        %p232 = pneg %p104
        %p233 = pneg %p101
        %p234 = pneg %p125
        %p235 = pneg %p122
        %p236 = pneg %p146
        %p237 = pneg %p143
        %p238 = pneg %p172
        %p239 = pneg %p169
        %s240 = sand.u32 %s159, 1
        %s241 = scalar_lea.sflag [#allocation3], %s240
        %s242 = sand.u32 %s159, 1
        %s243 = smul.addr %s242, 8
        %s244 = scalar_lea.vmem [#allocation2], %s243
        %p245 = scmp.lt.s32.totalorder %s20, 1
        %s246 = scalar_select %p245, %s20, 1
        %s247 = smul.addr %s246, 2
        %s248 = smul.addr %s247, 4
        %s249 = scalar_lea.vmem %s0, %s248
        %v250 = vld [vmem:[%s249] sm:$0xff]
        %v251 = vld [vmem:[%s1] ss:$4 sm:$0x3]
        %vm252 = vcmp.ne.s32.totalorder %v251, 0
        %s253 = scalar_lea.vmem %s1, 1
        %v254 = vld [vmem:[%s253] ss:$4 sm:$0x3]
        %vm255 = vcmp.ne.s32.totalorder %v254, 0
        %s256 = scalar_lea.vmem %s1, 2
        %v257 = vld [vmem:[%s256] ss:$4 sm:$0x3]
        %vm258 = vcmp.ne.s32.totalorder %v257, 0
        %s259 = scalar_lea.vmem %s1, 3
        %v260 = vld [vmem:[%s259] ss:$4 sm:$0x3]
        %vm261 = vcmp.ne.s32.totalorder %v260, 0
        %v262 = vld [vmem:[%s3] sm:$0xf]
        %264 = vset.pattern.permute.xlu0 0
        %265 = vperm.xlu0 %264, %v262
        %v266 = vpop.permute.xlu0 %265
        %v269 = vcombine.high %v250, %v250
        %271 = vrot.lane.b32.xlu0 %v250, 127
        %v272 = vpop.permute.xlu0 %271
        %273 = vrot.lane.b32.xlu0 %v269, 127
        %v274 = vpop.permute.xlu0 %273
        %v275 = vlaneseq
        %v276 = vand.u32 %v275, 127
        %vm277 = vcmp.lt.s32.totalorder %v276, 127
        %v278 = vsel %vm277, %v272, %v274
        %v279 = vsel %vm277, %v274, %v272
        %280 = vrot.lane.b32.xlu0 %v250, 1
        %v281 = vpop.permute.xlu0 %280
        %282 = vrot.lane.b32.xlu0 %v269, 1
        %v283 = vpop.permute.xlu0 %282
        %vm284 = vcmp.lt.s32.totalorder %v276, 1
        %v285 = vsel %vm284, %v281, %v283
        %v286 = vsel %vm284, %v283, %v281
        %v287 = vsel %vm252, 1, 0
        %v288 = vlaneseq
        %v289 = vshrl.u32 %v288, 7
        %v290 = vsub.s32 0, %v289
        %v291 = vrot.slane %v287, %v290
        %v292 = vlaneseq
        %v293 = vshrl.u32 %v292, 7
        %v294 = vsub.s32 1, %v293
        %v295 = vrot.slane %v287, %v294
        %vm296 = vcmp.eq.s32.totalorder %v291, 1
        %vm297 = vcmp.eq.s32.totalorder %v295, 1
        %v298 = vsel %vm296, %v278, %v286
        %v299 = vsel %vm297, %v279, %v285
        %v300 = vsel %vm255, 1, 0
        %v301 = vlaneseq
        %v302 = vshrl.u32 %v301, 7
        %v303 = vsub.s32 0, %v302
        %v304 = vrot.slane %v300, %v303
        %v305 = vlaneseq
        %v306 = vshrl.u32 %v305, 7
        %v307 = vsub.s32 1, %v306
        %v308 = vrot.slane %v300, %v307
        %vm309 = vcmp.eq.s32.totalorder %v304, 1
        %vm310 = vcmp.eq.s32.totalorder %v308, 1
        %v311 = vsel %vm309, %v286, %v278
        %v312 = vsel %vm310, %v285, %v279
        %313 = vrot.lane.b32.xlu0 %v298, 112
        %v314 = vpop.permute.xlu0 %313
        %315 = vrot.lane.b32.xlu0 %v299, 112
        %v316 = vpop.permute.xlu0 %315
        %vm317 = vcmp.lt.s32.totalorder %v276, 112
        %v318 = vsel %vm317, %v314, %v316
        %v319 = vsel %vm317, %v316, %v314
        %320 = vrot.lane.b32.xlu0 %v298, 16
        %v321 = vpop.permute.xlu0 %320
        %322 = vrot.lane.b32.xlu0 %v299, 16
        %v323 = vpop.permute.xlu0 %322
        %vm324 = vcmp.lt.s32.totalorder %v276, 16
        %v325 = vsel %vm324, %v321, %v323
        %v326 = vsel %vm324, %v323, %v321
        %v327 = vsel %vm258, 1, 0
        %v328 = vlaneseq
        %v329 = vshrl.u32 %v328, 7
        %v330 = vsub.s32 0, %v329
        %v331 = vrot.slane %v327, %v330
        %v332 = vlaneseq
        %v333 = vshrl.u32 %v332, 7
        %v334 = vsub.s32 1, %v333
        %v335 = vrot.slane %v327, %v334
        %vm336 = vcmp.eq.s32.totalorder %v331, 1
        %vm337 = vcmp.eq.s32.totalorder %v335, 1
        %v338 = vsel %vm336, %v318, %v326
        %v339 = vsel %vm337, %v319, %v325
        %v340 = vsel %vm261, 1, 0
        %v341 = vlaneseq
        %v342 = vshrl.u32 %v341, 7
        %v343 = vsub.s32 0, %v342
        %v344 = vrot.slane %v340, %v343
        %v345 = vlaneseq
        %v346 = vshrl.u32 %v345, 7
        %v347 = vsub.s32 1, %v346
        %v348 = vrot.slane %v340, %v347
        %vm349 = vcmp.eq.s32.totalorder %v344, 1
        %vm350 = vcmp.eq.s32.totalorder %v348, 1
        %v351 = vsel %vm349, %v326, %v318
        %v352 = vsel %vm350, %v325, %v319
        %353 = vrot.lane.b32.xlu0 %v250, 112
        %v354 = vpop.permute.xlu0 %353
        %355 = vrot.lane.b32.xlu0 %v269, 112
        %v356 = vpop.permute.xlu0 %355
        %v357 = vsel %vm317, %v354, %v356
        %v358 = vsel %vm317, %v356, %v354
        %359 = vrot.lane.b32.xlu0 %v250, 16
        %v360 = vpop.permute.xlu0 %359
        %361 = vrot.lane.b32.xlu0 %v269, 16
        %v362 = vpop.permute.xlu0 %361
        %v363 = vsel %vm324, %v360, %v362
        %v364 = vsel %vm324, %v362, %v360
        %v365 = vsel %vm336, %v357, %v364
        %v366 = vsel %vm337, %v358, %v363
        %v367 = vsel %vm349, %v364, %v357
        %v368 = vsel %vm350, %v363, %v358
        %369 = vrot.lane.b32.xlu0 %v311, 112
        %v370 = vpop.permute.xlu0 %369
        %371 = vrot.lane.b32.xlu0 %v312, 112
        %v372 = vpop.permute.xlu0 %371
        %v373 = vsel %vm317, %v370, %v372
        %v374 = vsel %vm317, %v372, %v370
        %375 = vrot.lane.b32.xlu0 %v311, 16
        %v376 = vpop.permute.xlu0 %375
        %377 = vrot.lane.b32.xlu0 %v312, 16
        %v378 = vpop.permute.xlu0 %377
        %v379 = vsel %vm324, %v376, %v378
        %v380 = vsel %vm324, %v378, %v376
        %v381 = vsel %vm336, %v373, %v380
        %v382 = vsel %vm337, %v374, %v379
        %v383 = vsel %vm349, %v380, %v373
        %v384 = vsel %vm350, %v379, %v374
        %v385 = vld [vmem:[%s2] sm:$0xf]
        %vm386 = vcmask 31744
        %v388 = vsel %vm386, %v385, 0
        %vm390 = vcmask 1043456
        %v392 = vsel %vm390, %v338, 0
        %v395 = vsel %vm390, %v339, 0
        %397 = vmatprep.subr.mxu0 %v395
        %398 = vmatpush1.msra.mxu0 %v392
        %399 = vmatprep.subr.mxu0 0.0
        %400 = vmatpush1.msra.mxu0 0.0
        %401 = vmatprep.subr.mxu0 0.0
        %402 = vmatpush1.msra.mxu0 0.0
        %403 = vmatprep.subr.mxu0 0.0
        %404 = vmatpush1.msra.mxu0 0.0
        %405 = vmatprep.subr.mxu0 0.0
        %406 = vmatpush1.msra.mxu0 0.0
        %407 = vmatprep.subr.mxu0 0.0
        %408 = vmatpush1.msra.mxu0 0.0
        %409 = vmatprep.subr.mxu0 0.0
        %410 = vmatpush1.msra.mxu0 0.0
        %411 = vmatprep.subr.mxu0 0.0
        %412 = vmatpush1.msra.mxu0 0.0
        %413 = vmatprep.subr.mxu0 0.0
        %414 = vmatpush1.msra.mxu0 0.0
        %415 = vmatprep.subr.mxu0 0.0
        %416 = vmatpush1.msra.mxu0 0.0
        %417 = vmatprep.subr.mxu0 0.0
        %418 = vmatpush1.msra.mxu0 0.0
        %419 = vmatprep.subr.mxu0 0.0
        %420 = vmatpush1.msra.mxu0 0.0
        %421 = vmatprep.subr.mxu0 0.0
        %422 = vmatpush1.msra.mxu0 0.0
        %423 = vmatprep.subr.mxu0 0.0
        %424 = vmatpush1.msra.mxu0 0.0
        %425 = vmatprep.subr.mxu0 0.0
        %426 = vmatpush1.msra.mxu0 0.0
        %427 = vmatprep.subr.mxu0 0.0
        %428 = vmatpush1.msra.mxu0 0.0
        %429 = vmatprep.subr.mxu0 0.0
        %430 = vmatpush1.msra.mxu0 0.0
        %431 = vmatprep.subr.mxu0 0.0
        %432 = vmatpush1.msra.mxu0 0.0
        %433 = vmatprep.subr.mxu0 0.0
        %434 = vmatpush1.msra.mxu0 0.0
        %435 = vmatprep.subr.mxu0 0.0
        %436 = vmatpush1.msra.mxu0 0.0
        %437 = vmatprep.subr.mxu0 0.0
        %438 = vmatpush1.msra.mxu0 0.0
        %439 = vmatprep.subr.mxu0 0.0
        %440 = vmatpush1.msra.mxu0 0.0
        %441 = vmatprep.subr.mxu0 0.0
        %442 = vmatpush1.msra.mxu0 0.0
        %443 = vmatprep.subr.mxu0 0.0
        %444 = vmatpush1.msra.mxu0 0.0
        %445 = vmatprep.subr.mxu0 0.0
        %446 = vmatpush1.msra.mxu0 0.0
        %447 = vmatprep.subr.mxu0 0.0
        %448 = vmatpush1.msra.mxu0 0.0
        %449 = vmatprep.subr.mxu0 0.0
        %450 = vmatpush1.msra.mxu0 0.0
        %451 = vmatprep.subr.mxu0 0.0
        %452 = vmatpush1.msra.mxu0 0.0
        %453 = vmatprep.subr.mxu0 0.0
        %454 = vmatpush1.msra.mxu0 0.0
        %455 = vmatprep.subr.mxu0 0.0
        %456 = vmatpush1.msra.mxu0 0.0
        %457 = vmatprep.subr.mxu0 0.0
        %458 = vmatpush1.msra.mxu0 0.0
        %459 = vmatprep.subr.mxu0 0.0
        %460 = vmatpush1.msra.mxu0 0.0
        %461 = vmatprep.mubr.f32.mxu0 0.0
        %462 = vmatmul.mubr.f32.gmra.mrb[0].mxu0 %v388
        %v463 = vpop.f32.mrb[0].mxu0
        %v464 = vadd.f32 0.0, %v463
        %v465 = vpop.f32.mrb[0].mxu0
        %v466 = vadd.f32 0.0, %v465
        %467 = vdwg.mxu0
        %v468 = vadd.f32 %v266, %v464
        %v469 = vadd.f32 %v266, %v466
        %s470 = scalar_lea.vmem %s2, 4
        %v471 = vld [vmem:[%s470] sm:$0xf]
        %v473 = vsel %vm386, %v471, 0
        %v476 = vsel %vm390, %v365, 0
        %v479 = vsel %vm390, %v366, 0
        %481 = vmatprep.subr.mxu0 %v479
        %482 = vmatpush1.msra.mxu0 %v476
        %483 = vmatprep.subr.mxu0 0.0
        %484 = vmatpush1.msra.mxu0 0.0
        %485 = vmatprep.subr.mxu0 0.0
        %486 = vmatpush1.msra.mxu0 0.0
        %487 = vmatprep.subr.mxu0 0.0
        %488 = vmatpush1.msra.mxu0 0.0
        %489 = vmatprep.subr.mxu0 0.0
        %490 = vmatpush1.msra.mxu0 0.0
        %491 = vmatprep.subr.mxu0 0.0
        %492 = vmatpush1.msra.mxu0 0.0
        %493 = vmatprep.subr.mxu0 0.0
        %494 = vmatpush1.msra.mxu0 0.0
        %495 = vmatprep.subr.mxu0 0.0
        %496 = vmatpush1.msra.mxu0 0.0
        %497 = vmatprep.subr.mxu0 0.0
        %498 = vmatpush1.msra.mxu0 0.0
        %499 = vmatprep.subr.mxu0 0.0
        %500 = vmatpush1.msra.mxu0 0.0
        %501 = vmatprep.subr.mxu0 0.0
        %502 = vmatpush1.msra.mxu0 0.0
        %503 = vmatprep.subr.mxu0 0.0
        %504 = vmatpush1.msra.mxu0 0.0
        %505 = vmatprep.subr.mxu0 0.0
        %506 = vmatpush1.msra.mxu0 0.0
        %507 = vmatprep.subr.mxu0 0.0
        %508 = vmatpush1.msra.mxu0 0.0
        %509 = vmatprep.subr.mxu0 0.0
        %510 = vmatpush1.msra.mxu0 0.0
        %511 = vmatprep.subr.mxu0 0.0
        %512 = vmatpush1.msra.mxu0 0.0
        %513 = vmatprep.subr.mxu0 0.0
        %514 = vmatpush1.msra.mxu0 0.0
        %515 = vmatprep.subr.mxu0 0.0
        %516 = vmatpush1.msra.mxu0 0.0
        %517 = vmatprep.subr.mxu0 0.0
        %518 = vmatpush1.msra.mxu0 0.0
        %519 = vmatprep.subr.mxu0 0.0
        %520 = vmatpush1.msra.mxu0 0.0
        %521 = vmatprep.subr.mxu0 0.0
        %522 = vmatpush1.msra.mxu0 0.0
        %523 = vmatprep.subr.mxu0 0.0
        %524 = vmatpush1.msra.mxu0 0.0
        %525 = vmatprep.subr.mxu0 0.0
        %526 = vmatpush1.msra.mxu0 0.0
        %527 = vmatprep.subr.mxu0 0.0
        %528 = vmatpush1.msra.mxu0 0.0
        %529 = vmatprep.subr.mxu0 0.0
        %530 = vmatpush1.msra.mxu0 0.0
        %531 = vmatprep.subr.mxu0 0.0
        %532 = vmatpush1.msra.mxu0 0.0
        %533 = vmatprep.subr.mxu0 0.0
        %534 = vmatpush1.msra.mxu0 0.0
        %535 = vmatprep.subr.mxu0 0.0
        %536 = vmatpush1.msra.mxu0 0.0
        %537 = vmatprep.subr.mxu0 0.0
        %538 = vmatpush1.msra.mxu0 0.0
        %539 = vmatprep.subr.mxu0 0.0
        %540 = vmatpush1.msra.mxu0 0.0
        %541 = vmatprep.subr.mxu0 0.0
        %542 = vmatpush1.msra.mxu0 0.0
        %543 = vmatprep.subr.mxu0 0.0
        %544 = vmatpush1.msra.mxu0 0.0
        %545 = vmatprep.mubr.f32.mxu0 0.0
        %546 = vmatmul.mubr.f32.gmra.mrb[0].mxu0 %v473
        %v547 = vpop.f32.mrb[0].mxu0
        %v548 = vadd.f32 0.0, %v547
        %v549 = vpop.f32.mrb[0].mxu0
        %v550 = vadd.f32 0.0, %v549
        %551 = vdwg.mxu0
        %v552 = vadd.f32 %v468, %v548
        %v553 = vadd.f32 %v469, %v550
        %s554 = scalar_lea.vmem %s2, 8
        %v555 = vld [vmem:[%s554] sm:$0xf]
        %v557 = vsel %vm386, %v555, 0
        %v560 = vsel %vm390, %v381, 0
        %v563 = vsel %vm390, %v382, 0
        %565 = vmatprep.subr.mxu0 %v563
        %566 = vmatpush1.msra.mxu0 %v560
        %567 = vmatprep.subr.mxu0 0.0
        %568 = vmatpush1.msra.mxu0 0.0
        %569 = vmatprep.subr.mxu0 0.0
        %570 = vmatpush1.msra.mxu0 0.0
        %571 = vmatprep.subr.mxu0 0.0
        %572 = vmatpush1.msra.mxu0 0.0
        %573 = vmatprep.subr.mxu0 0.0
        %574 = vmatpush1.msra.mxu0 0.0
        %575 = vmatprep.subr.mxu0 0.0
        %576 = vmatpush1.msra.mxu0 0.0
        %577 = vmatprep.subr.mxu0 0.0
        %578 = vmatpush1.msra.mxu0 0.0
        %579 = vmatprep.subr.mxu0 0.0
        %580 = vmatpush1.msra.mxu0 0.0
        %581 = vmatprep.subr.mxu0 0.0
        %582 = vmatpush1.msra.mxu0 0.0
        %583 = vmatprep.subr.mxu0 0.0
        %584 = vmatpush1.msra.mxu0 0.0
        %585 = vmatprep.subr.mxu0 0.0
        %586 = vmatpush1.msra.mxu0 0.0
        %587 = vmatprep.subr.mxu0 0.0
        %588 = vmatpush1.msra.mxu0 0.0
        %589 = vmatprep.subr.mxu0 0.0
        %590 = vmatpush1.msra.mxu0 0.0
        %591 = vmatprep.subr.mxu0 0.0
        %592 = vmatpush1.msra.mxu0 0.0
        %593 = vmatprep.subr.mxu0 0.0
        %594 = vmatpush1.msra.mxu0 0.0
        %595 = vmatprep.subr.mxu0 0.0
        %596 = vmatpush1.msra.mxu0 0.0
        %597 = vmatprep.subr.mxu0 0.0
        %598 = vmatpush1.msra.mxu0 0.0
        %599 = vmatprep.subr.mxu0 0.0
        %600 = vmatpush1.msra.mxu0 0.0
        %601 = vmatprep.subr.mxu0 0.0
        %602 = vmatpush1.msra.mxu0 0.0
        %603 = vmatprep.subr.mxu0 0.0
        %604 = vmatpush1.msra.mxu0 0.0
        %605 = vmatprep.subr.mxu0 0.0
        %606 = vmatpush1.msra.mxu0 0.0
        %607 = vmatprep.subr.mxu0 0.0
        %608 = vmatpush1.msra.mxu0 0.0
        %609 = vmatprep.subr.mxu0 0.0
        %610 = vmatpush1.msra.mxu0 0.0
        %611 = vmatprep.subr.mxu0 0.0
        %612 = vmatpush1.msra.mxu0 0.0
        %613 = vmatprep.subr.mxu0 0.0
        %614 = vmatpush1.msra.mxu0 0.0
        %615 = vmatprep.subr.mxu0 0.0
        %616 = vmatpush1.msra.mxu0 0.0
        %617 = vmatprep.subr.mxu0 0.0
        %618 = vmatpush1.msra.mxu0 0.0
        %619 = vmatprep.subr.mxu0 0.0
        %620 = vmatpush1.msra.mxu0 0.0
        %621 = vmatprep.subr.mxu0 0.0
        %622 = vmatpush1.msra.mxu0 0.0
        %623 = vmatprep.subr.mxu0 0.0
        %624 = vmatpush1.msra.mxu0 0.0
        %625 = vmatprep.subr.mxu0 0.0
        %626 = vmatpush1.msra.mxu0 0.0
        %627 = vmatprep.subr.mxu0 0.0
        %628 = vmatpush1.msra.mxu0 0.0
        %629 = vmatprep.mubr.f32.mxu0 0.0
        %630 = vmatmul.mubr.f32.gmra.mrb[0].mxu0 %v557
        %v631 = vpop.f32.mrb[0].mxu0
        %v632 = vadd.f32 0.0, %v631
        %v633 = vpop.f32.mrb[0].mxu0
        %v634 = vadd.f32 0.0, %v633
        %635 = vdwg.mxu0
        %v636 = vadd.f32 %v552, %v632
        %v637 = vadd.f32 %v553, %v634
        %s638 = scalar_lea.vmem %s2, 12
        %v639 = vld [vmem:[%s638] sm:$0xf]
        %v641 = vsel %vm386, %v639, 0
        %v644 = vsel %vm390, %v298, 0
        %v647 = vsel %vm390, %v299, 0
        %649 = vmatprep.subr.mxu0 %v647
        %650 = vmatpush1.msra.mxu0 %v644
        %651 = vmatprep.subr.mxu0 0.0
        %652 = vmatpush1.msra.mxu0 0.0
        %653 = vmatprep.subr.mxu0 0.0
        %654 = vmatpush1.msra.mxu0 0.0
        %655 = vmatprep.subr.mxu0 0.0
        %656 = vmatpush1.msra.mxu0 0.0
        %657 = vmatprep.subr.mxu0 0.0
        %658 = vmatpush1.msra.mxu0 0.0
        %659 = vmatprep.subr.mxu0 0.0
        %660 = vmatpush1.msra.mxu0 0.0
        %661 = vmatprep.subr.mxu0 0.0
        %662 = vmatpush1.msra.mxu0 0.0
        %663 = vmatprep.subr.mxu0 0.0
        %664 = vmatpush1.msra.mxu0 0.0
        %665 = vmatprep.subr.mxu0 0.0
        %666 = vmatpush1.msra.mxu0 0.0
        %667 = vmatprep.subr.mxu0 0.0
        %668 = vmatpush1.msra.mxu0 0.0
        %669 = vmatprep.subr.mxu0 0.0
        %670 = vmatpush1.msra.mxu0 0.0
        %671 = vmatprep.subr.mxu0 0.0
        %672 = vmatpush1.msra.mxu0 0.0
        %673 = vmatprep.subr.mxu0 0.0
        %674 = vmatpush1.msra.mxu0 0.0
        %675 = vmatprep.subr.mxu0 0.0
        %676 = vmatpush1.msra.mxu0 0.0
        %677 = vmatprep.subr.mxu0 0.0
        %678 = vmatpush1.msra.mxu0 0.0
        %679 = vmatprep.subr.mxu0 0.0
        %680 = vmatpush1.msra.mxu0 0.0
        %681 = vmatprep.subr.mxu0 0.0
        %682 = vmatpush1.msra.mxu0 0.0
        %683 = vmatprep.subr.mxu0 0.0
        %684 = vmatpush1.msra.mxu0 0.0
        %685 = vmatprep.subr.mxu0 0.0
        %686 = vmatpush1.msra.mxu0 0.0
        %687 = vmatprep.subr.mxu0 0.0
        %688 = vmatpush1.msra.mxu0 0.0
        %689 = vmatprep.subr.mxu0 0.0
        %690 = vmatpush1.msra.mxu0 0.0
        %691 = vmatprep.subr.mxu0 0.0
        %692 = vmatpush1.msra.mxu0 0.0
        %693 = vmatprep.subr.mxu0 0.0
        %694 = vmatpush1.msra.mxu0 0.0
        %695 = vmatprep.subr.mxu0 0.0
        %696 = vmatpush1.msra.mxu0 0.0
        %697 = vmatprep.subr.mxu0 0.0
        %698 = vmatpush1.msra.mxu0 0.0
        %699 = vmatprep.subr.mxu0 0.0
        %700 = vmatpush1.msra.mxu0 0.0
        %701 = vmatprep.subr.mxu0 0.0
        %702 = vmatpush1.msra.mxu0 0.0
        %703 = vmatprep.subr.mxu0 0.0
        %704 = vmatpush1.msra.mxu0 0.0
        %705 = vmatprep.subr.mxu0 0.0
        %706 = vmatpush1.msra.mxu0 0.0
        %707 = vmatprep.subr.mxu0 0.0
        %708 = vmatpush1.msra.mxu0 0.0
        %709 = vmatprep.subr.mxu0 0.0
        %710 = vmatpush1.msra.mxu0 0.0
        %711 = vmatprep.subr.mxu0 0.0
        %712 = vmatpush1.msra.mxu0 0.0
        %713 = vmatprep.mubr.f32.mxu0 0.0
        %714 = vmatmul.mubr.f32.gmra.mrb[0].mxu0 %v641
        %v715 = vpop.f32.mrb[0].mxu0
        %v716 = vadd.f32 0.0, %v715
        %v717 = vpop.f32.mrb[0].mxu0
        %v718 = vadd.f32 0.0, %v717
        %719 = vdwg.mxu0
        %v720 = vadd.f32 %v636, %v716
        %v721 = vadd.f32 %v637, %v718
        %s722 = scalar_lea.vmem %s2, 16
        %v723 = vld [vmem:[%s722] sm:$0xf]
        %v725 = vsel %vm386, %v723, 0
        %v727 = vsel %vm390, %v250, 0
        %v729 = vsel %vm390, %v269, 0
        %731 = vmatprep.subr.mxu0 %v729
        %732 = vmatpush1.msra.mxu0 %v727
        %733 = vmatprep.subr.mxu0 0.0
        %734 = vmatpush1.msra.mxu0 0.0
        %735 = vmatprep.subr.mxu0 0.0
        %736 = vmatpush1.msra.mxu0 0.0
        %737 = vmatprep.subr.mxu0 0.0
        %738 = vmatpush1.msra.mxu0 0.0
        %739 = vmatprep.subr.mxu0 0.0
        %740 = vmatpush1.msra.mxu0 0.0
        %741 = vmatprep.subr.mxu0 0.0
        %742 = vmatpush1.msra.mxu0 0.0
        %743 = vmatprep.subr.mxu0 0.0
        %744 = vmatpush1.msra.mxu0 0.0
        %745 = vmatprep.subr.mxu0 0.0
        %746 = vmatpush1.msra.mxu0 0.0
        %747 = vmatprep.subr.mxu0 0.0
        %748 = vmatpush1.msra.mxu0 0.0
        %749 = vmatprep.subr.mxu0 0.0
        %750 = vmatpush1.msra.mxu0 0.0
        %751 = vmatprep.subr.mxu0 0.0
        %752 = vmatpush1.msra.mxu0 0.0
        %753 = vmatprep.subr.mxu0 0.0
        %754 = vmatpush1.msra.mxu0 0.0
        %755 = vmatprep.subr.mxu0 0.0
        %756 = vmatpush1.msra.mxu0 0.0
        %757 = vmatprep.subr.mxu0 0.0
        %758 = vmatpush1.msra.mxu0 0.0
        %759 = vmatprep.subr.mxu0 0.0
        %760 = vmatpush1.msra.mxu0 0.0
        %761 = vmatprep.subr.mxu0 0.0
        %762 = vmatpush1.msra.mxu0 0.0
        %763 = vmatprep.subr.mxu0 0.0
        %764 = vmatpush1.msra.mxu0 0.0
        %765 = vmatprep.subr.mxu0 0.0
        %766 = vmatpush1.msra.mxu0 0.0
        %767 = vmatprep.subr.mxu0 0.0
        %768 = vmatpush1.msra.mxu0 0.0
        %769 = vmatprep.subr.mxu0 0.0
        %770 = vmatpush1.msra.mxu0 0.0
        %771 = vmatprep.subr.mxu0 0.0
        %772 = vmatpush1.msra.mxu0 0.0
        %773 = vmatprep.subr.mxu0 0.0
        %774 = vmatpush1.msra.mxu0 0.0
        %775 = vmatprep.subr.mxu0 0.0
        %776 = vmatpush1.msra.mxu0 0.0
        %777 = vmatprep.subr.mxu0 0.0
        %778 = vmatpush1.msra.mxu0 0.0
        %779 = vmatprep.subr.mxu0 0.0
        %780 = vmatpush1.msra.mxu0 0.0
        %781 = vmatprep.subr.mxu0 0.0
        %782 = vmatpush1.msra.mxu0 0.0
        %783 = vmatprep.subr.mxu0 0.0
        %784 = vmatpush1.msra.mxu0 0.0
        %785 = vmatprep.subr.mxu0 0.0
        %786 = vmatpush1.msra.mxu0 0.0
        %787 = vmatprep.subr.mxu0 0.0
        %788 = vmatpush1.msra.mxu0 0.0
        %789 = vmatprep.subr.mxu0 0.0
        %790 = vmatpush1.msra.mxu0 0.0
        %791 = vmatprep.subr.mxu0 0.0
        %792 = vmatpush1.msra.mxu0 0.0
        %793 = vmatprep.subr.mxu0 0.0
        %794 = vmatpush1.msra.mxu0 0.0
        %795 = vmatprep.mubr.f32.mxu0 0.0
        %796 = vmatmul.mubr.f32.gmra.mrb[0].mxu0 %v725
        %v797 = vpop.f32.mrb[0].mxu0
        %v798 = vadd.f32 0.0, %v797
        %v799 = vpop.f32.mrb[0].mxu0
        %v800 = vadd.f32 0.0, %v799
        %801 = vdwg.mxu0
        %v802 = vadd.f32 %v720, %v798
        %v803 = vadd.f32 %v721, %v800
        %s804 = scalar_lea.vmem %s2, 20
        %v805 = vld [vmem:[%s804] sm:$0xf]
        %v807 = vsel %vm386, %v805, 0
        %v810 = vsel %vm390, %v311, 0
        %v813 = vsel %vm390, %v312, 0
        %815 = vmatprep.subr.mxu0 %v813
        %816 = vmatpush1.msra.mxu0 %v810
        %817 = vmatprep.subr.mxu0 0.0
        %818 = vmatpush1.msra.mxu0 0.0
        %819 = vmatprep.subr.mxu0 0.0
        %820 = vmatpush1.msra.mxu0 0.0
        %821 = vmatprep.subr.mxu0 0.0
        %822 = vmatpush1.msra.mxu0 0.0
        %823 = vmatprep.subr.mxu0 0.0
        %824 = vmatpush1.msra.mxu0 0.0
        %825 = vmatprep.subr.mxu0 0.0
        %826 = vmatpush1.msra.mxu0 0.0
        %827 = vmatprep.subr.mxu0 0.0
        %828 = vmatpush1.msra.mxu0 0.0
        %829 = vmatprep.subr.mxu0 0.0
        %830 = vmatpush1.msra.mxu0 0.0
        %831 = vmatprep.subr.mxu0 0.0
        %832 = vmatpush1.msra.mxu0 0.0
        %833 = vmatprep.subr.mxu0 0.0
        %834 = vmatpush1.msra.mxu0 0.0
        %835 = vmatprep.subr.mxu0 0.0
        %836 = vmatpush1.msra.mxu0 0.0
        %837 = vmatprep.subr.mxu0 0.0
        %838 = vmatpush1.msra.mxu0 0.0
        %839 = vmatprep.subr.mxu0 0.0
        %840 = vmatpush1.msra.mxu0 0.0
        %841 = vmatprep.subr.mxu0 0.0
        %842 = vmatpush1.msra.mxu0 0.0
        %843 = vmatprep.subr.mxu0 0.0
        %844 = vmatpush1.msra.mxu0 0.0
        %845 = vmatprep.subr.mxu0 0.0
        %846 = vmatpush1.msra.mxu0 0.0
        %847 = vmatprep.subr.mxu0 0.0
        %848 = vmatpush1.msra.mxu0 0.0
        %849 = vmatprep.subr.mxu0 0.0
        %850 = vmatpush1.msra.mxu0 0.0
        %851 = vmatprep.subr.mxu0 0.0
        %852 = vmatpush1.msra.mxu0 0.0
        %853 = vmatprep.subr.mxu0 0.0
        %854 = vmatpush1.msra.mxu0 0.0
        %855 = vmatprep.subr.mxu0 0.0
        %856 = vmatpush1.msra.mxu0 0.0
        %857 = vmatprep.subr.mxu0 0.0
        %858 = vmatpush1.msra.mxu0 0.0
        %859 = vmatprep.subr.mxu0 0.0
        %860 = vmatpush1.msra.mxu0 0.0
        %861 = vmatprep.subr.mxu0 0.0
        %862 = vmatpush1.msra.mxu0 0.0
        %863 = vmatprep.subr.mxu0 0.0
        %864 = vmatpush1.msra.mxu0 0.0
        %865 = vmatprep.subr.mxu0 0.0
        %866 = vmatpush1.msra.mxu0 0.0
        %867 = vmatprep.subr.mxu0 0.0
        %868 = vmatpush1.msra.mxu0 0.0
        %869 = vmatprep.subr.mxu0 0.0
        %870 = vmatpush1.msra.mxu0 0.0
        %871 = vmatprep.subr.mxu0 0.0
        %872 = vmatpush1.msra.mxu0 0.0
        %873 = vmatprep.subr.mxu0 0.0
        %874 = vmatpush1.msra.mxu0 0.0
        %875 = vmatprep.subr.mxu0 0.0
        %876 = vmatpush1.msra.mxu0 0.0
        %877 = vmatprep.subr.mxu0 0.0
        %878 = vmatpush1.msra.mxu0 0.0
        %879 = vmatprep.mubr.f32.mxu0 0.0
        %880 = vmatmul.mubr.f32.gmra.mrb[0].mxu0 %v807
        %v881 = vpop.f32.mrb[0].mxu0
        %v882 = vadd.f32 0.0, %v881
        %v883 = vpop.f32.mrb[0].mxu0
        %v884 = vadd.f32 0.0, %v883
        %885 = vdwg.mxu0
        %v886 = vadd.f32 %v802, %v882
        %v887 = vadd.f32 %v803, %v884
        %s888 = scalar_lea.vmem %s2, 24
        %v889 = vld [vmem:[%s888] sm:$0xf]
        %v891 = vsel %vm386, %v889, 0
        %v894 = vsel %vm390, %v351, 0
        %v897 = vsel %vm390, %v352, 0
        %899 = vmatprep.subr.mxu0 %v897
        %900 = vmatpush1.msra.mxu0 %v894
        %901 = vmatprep.subr.mxu0 0.0
        %902 = vmatpush1.msra.mxu0 0.0
        %903 = vmatprep.subr.mxu0 0.0
        %904 = vmatpush1.msra.mxu0 0.0
        %905 = vmatprep.subr.mxu0 0.0
        %906 = vmatpush1.msra.mxu0 0.0
        %907 = vmatprep.subr.mxu0 0.0
        %908 = vmatpush1.msra.mxu0 0.0
        %909 = vmatprep.subr.mxu0 0.0
        %910 = vmatpush1.msra.mxu0 0.0
        %911 = vmatprep.subr.mxu0 0.0
        %912 = vmatpush1.msra.mxu0 0.0
        %913 = vmatprep.subr.mxu0 0.0
        %914 = vmatpush1.msra.mxu0 0.0
        %915 = vmatprep.subr.mxu0 0.0
        %916 = vmatpush1.msra.mxu0 0.0
        %917 = vmatprep.subr.mxu0 0.0
        %918 = vmatpush1.msra.mxu0 0.0
        %919 = vmatprep.subr.mxu0 0.0
        %920 = vmatpush1.msra.mxu0 0.0
        %921 = vmatprep.subr.mxu0 0.0
        %922 = vmatpush1.msra.mxu0 0.0
        %923 = vmatprep.subr.mxu0 0.0
        %924 = vmatpush1.msra.mxu0 0.0
        %925 = vmatprep.subr.mxu0 0.0
        %926 = vmatpush1.msra.mxu0 0.0
        %927 = vmatprep.subr.mxu0 0.0
        %928 = vmatpush1.msra.mxu0 0.0
        %929 = vmatprep.subr.mxu0 0.0
        %930 = vmatpush1.msra.mxu0 0.0
        %931 = vmatprep.subr.mxu0 0.0
        %932 = vmatpush1.msra.mxu0 0.0
        %933 = vmatprep.subr.mxu0 0.0
        %934 = vmatpush1.msra.mxu0 0.0
        %935 = vmatprep.subr.mxu0 0.0
        %936 = vmatpush1.msra.mxu0 0.0
        %937 = vmatprep.subr.mxu0 0.0
        %938 = vmatpush1.msra.mxu0 0.0
        %939 = vmatprep.subr.mxu0 0.0
        %940 = vmatpush1.msra.mxu0 0.0
        %941 = vmatprep.subr.mxu0 0.0
        %942 = vmatpush1.msra.mxu0 0.0
        %943 = vmatprep.subr.mxu0 0.0
        %944 = vmatpush1.msra.mxu0 0.0
        %945 = vmatprep.subr.mxu0 0.0
        %946 = vmatpush1.msra.mxu0 0.0
        %947 = vmatprep.subr.mxu0 0.0
        %948 = vmatpush1.msra.mxu0 0.0
        %949 = vmatprep.subr.mxu0 0.0
        %950 = vmatpush1.msra.mxu0 0.0
        %951 = vmatprep.subr.mxu0 0.0
        %952 = vmatpush1.msra.mxu0 0.0
        %953 = vmatprep.subr.mxu0 0.0
        %954 = vmatpush1.msra.mxu0 0.0
        %955 = vmatprep.subr.mxu0 0.0
        %956 = vmatpush1.msra.mxu0 0.0
        %957 = vmatprep.subr.mxu0 0.0
        %958 = vmatpush1.msra.mxu0 0.0
        %959 = vmatprep.subr.mxu0 0.0
        %960 = vmatpush1.msra.mxu0 0.0
        %961 = vmatprep.subr.mxu0 0.0
        %962 = vmatpush1.msra.mxu0 0.0
        %963 = vmatprep.mubr.f32.mxu0 0.0
        %964 = vmatmul.mubr.f32.gmra.mrb[0].mxu0 %v891
        %v965 = vpop.f32.mrb[0].mxu0
        %v966 = vadd.f32 0.0, %v965
        %v967 = vpop.f32.mrb[0].mxu0
        %v968 = vadd.f32 0.0, %v967
        %969 = vdwg.mxu0
        %v970 = vadd.f32 %v886, %v966
        %v971 = vadd.f32 %v887, %v968
        %s972 = scalar_lea.vmem %s2, 28
        %v973 = vld [vmem:[%s972] sm:$0xf]
        %v975 = vsel %vm386, %v973, 0
        %v978 = vsel %vm390, %v367, 0
        %v981 = vsel %vm390, %v368, 0
        %983 = vmatprep.subr.mxu0 %v981
        %984 = vmatpush1.msra.mxu0 %v978
        %985 = vmatprep.subr.mxu0 0.0
        %986 = vmatpush1.msra.mxu0 0.0
        %987 = vmatprep.subr.mxu0 0.0
        %988 = vmatpush1.msra.mxu0 0.0
        %989 = vmatprep.subr.mxu0 0.0
        %990 = vmatpush1.msra.mxu0 0.0
        %991 = vmatprep.subr.mxu0 0.0
        %992 = vmatpush1.msra.mxu0 0.0
        %993 = vmatprep.subr.mxu0 0.0
        %994 = vmatpush1.msra.mxu0 0.0
        %995 = vmatprep.subr.mxu0 0.0
        %996 = vmatpush1.msra.mxu0 0.0
        %997 = vmatprep.subr.mxu0 0.0
        %998 = vmatpush1.msra.mxu0 0.0
        %999 = vmatprep.subr.mxu0 0.0
        %1000 = vmatpush1.msra.mxu0 0.0
        %1001 = vmatprep.subr.mxu0 0.0
        %1002 = vmatpush1.msra.mxu0 0.0
        %1003 = vmatprep.subr.mxu0 0.0
        %1004 = vmatpush1.msra.mxu0 0.0
        %1005 = vmatprep.subr.mxu0 0.0
        %1006 = vmatpush1.msra.mxu0 0.0
        %1007 = vmatprep.subr.mxu0 0.0
        %1008 = vmatpush1.msra.mxu0 0.0
        %1009 = vmatprep.subr.mxu0 0.0
        %1010 = vmatpush1.msra.mxu0 0.0
        %1011 = vmatprep.subr.mxu0 0.0
        %1012 = vmatpush1.msra.mxu0 0.0
        %1013 = vmatprep.subr.mxu0 0.0
        %1014 = vmatpush1.msra.mxu0 0.0
        %1015 = vmatprep.subr.mxu0 0.0
        %1016 = vmatpush1.msra.mxu0 0.0
        %1017 = vmatprep.subr.mxu0 0.0
        %1018 = vmatpush1.msra.mxu0 0.0
        %1019 = vmatprep.subr.mxu0 0.0
        %1020 = vmatpush1.msra.mxu0 0.0
        %1021 = vmatprep.subr.mxu0 0.0
        %1022 = vmatpush1.msra.mxu0 0.0
        %1023 = vmatprep.subr.mxu0 0.0
        %1024 = vmatpush1.msra.mxu0 0.0
        %1025 = vmatprep.subr.mxu0 0.0
        %1026 = vmatpush1.msra.mxu0 0.0
        %1027 = vmatprep.subr.mxu0 0.0
        %1028 = vmatpush1.msra.mxu0 0.0
        %1029 = vmatprep.subr.mxu0 0.0
        %1030 = vmatpush1.msra.mxu0 0.0
        %1031 = vmatprep.subr.mxu0 0.0
        %1032 = vmatpush1.msra.mxu0 0.0
        %1033 = vmatprep.subr.mxu0 0.0
        %1034 = vmatpush1.msra.mxu0 0.0
        %1035 = vmatprep.subr.mxu0 0.0
        %1036 = vmatpush1.msra.mxu0 0.0
        %1037 = vmatprep.subr.mxu0 0.0
        %1038 = vmatpush1.msra.mxu0 0.0
        %1039 = vmatprep.subr.mxu0 0.0
        %1040 = vmatpush1.msra.mxu0 0.0
        %1041 = vmatprep.subr.mxu0 0.0
        %1042 = vmatpush1.msra.mxu0 0.0
        %1043 = vmatprep.subr.mxu0 0.0
        %1044 = vmatpush1.msra.mxu0 0.0
        %1045 = vmatprep.subr.mxu0 0.0
        %1046 = vmatpush1.msra.mxu0 0.0
        %1047 = vmatprep.mubr.f32.mxu0 0.0
        %1048 = vmatmul.mubr.f32.gmra.mrb[0].mxu0 %v975
        %v1049 = vpop.f32.mrb[0].mxu0
        %v1050 = vadd.f32 0.0, %v1049
        %v1051 = vpop.f32.mrb[0].mxu0
        %v1052 = vadd.f32 0.0, %v1051
        %1053 = vdwg.mxu0
        %v1054 = vadd.f32 %v970, %v1050
        %v1055 = vadd.f32 %v971, %v1052
        %s1056 = scalar_lea.vmem %s2, 32
        %v1057 = vld [vmem:[%s1056] sm:$0xf]
        %v1059 = vsel %vm386, %v1057, 0
        %v1062 = vsel %vm390, %v383, 0
        %v1065 = vsel %vm390, %v384, 0
        %1067 = vmatprep.subr.mxu0 %v1065
        %1068 = vmatpush1.msra.mxu0 %v1062
        %1069 = vmatprep.subr.mxu0 0.0
        %1070 = vmatpush1.msra.mxu0 0.0
        %1071 = vmatprep.subr.mxu0 0.0
        %1072 = vmatpush1.msra.mxu0 0.0
        %1073 = vmatprep.subr.mxu0 0.0
        %1074 = vmatpush1.msra.mxu0 0.0
        %1075 = vmatprep.subr.mxu0 0.0
        %1076 = vmatpush1.msra.mxu0 0.0
        %1077 = vmatprep.subr.mxu0 0.0
        %1078 = vmatpush1.msra.mxu0 0.0
        %1079 = vmatprep.subr.mxu0 0.0
        %1080 = vmatpush1.msra.mxu0 0.0
        %1081 = vmatprep.subr.mxu0 0.0
        %1082 = vmatpush1.msra.mxu0 0.0
        %1083 = vmatprep.subr.mxu0 0.0
        %1084 = vmatpush1.msra.mxu0 0.0
        %1085 = vmatprep.subr.mxu0 0.0
        %1086 = vmatpush1.msra.mxu0 0.0
        %1087 = vmatprep.subr.mxu0 0.0
        %1088 = vmatpush1.msra.mxu0 0.0
        %1089 = vmatprep.subr.mxu0 0.0
        %1090 = vmatpush1.msra.mxu0 0.0
        %1091 = vmatprep.subr.mxu0 0.0
        %1092 = vmatpush1.msra.mxu0 0.0
        %1093 = vmatprep.subr.mxu0 0.0
        %1094 = vmatpush1.msra.mxu0 0.0
        %1095 = vmatprep.subr.mxu0 0.0
        %1096 = vmatpush1.msra.mxu0 0.0
        %1097 = vmatprep.subr.mxu0 0.0
        %1098 = vmatpush1.msra.mxu0 0.0
        %1099 = vmatprep.subr.mxu0 0.0
        %1100 = vmatpush1.msra.mxu0 0.0
        %1101 = vmatprep.subr.mxu0 0.0
        %1102 = vmatpush1.msra.mxu0 0.0
        %1103 = vmatprep.subr.mxu0 0.0
        %1104 = vmatpush1.msra.mxu0 0.0
        %1105 = vmatprep.subr.mxu0 0.0
        %1106 = vmatpush1.msra.mxu0 0.0
        %1107 = vmatprep.subr.mxu0 0.0
        %1108 = vmatpush1.msra.mxu0 0.0
        %1109 = vmatprep.subr.mxu0 0.0
        %1110 = vmatpush1.msra.mxu0 0.0
        %1111 = vmatprep.subr.mxu0 0.0
        %1112 = vmatpush1.msra.mxu0 0.0
        %1113 = vmatprep.subr.mxu0 0.0
        %1114 = vmatpush1.msra.mxu0 0.0
        %1115 = vmatprep.subr.mxu0 0.0
        %1116 = vmatpush1.msra.mxu0 0.0
        %1117 = vmatprep.subr.mxu0 0.0
        %1118 = vmatpush1.msra.mxu0 0.0
        %1119 = vmatprep.subr.mxu0 0.0
        %1120 = vmatpush1.msra.mxu0 0.0
        %1121 = vmatprep.subr.mxu0 0.0
        %1122 = vmatpush1.msra.mxu0 0.0
        %1123 = vmatprep.subr.mxu0 0.0
        %1124 = vmatpush1.msra.mxu0 0.0
        %1125 = vmatprep.subr.mxu0 0.0
        %1126 = vmatpush1.msra.mxu0 0.0
        %1127 = vmatprep.subr.mxu0 0.0
        %1128 = vmatpush1.msra.mxu0 0.0
        %1129 = vmatprep.subr.mxu0 0.0
        %1130 = vmatpush1.msra.mxu0 0.0
        %1131 = vmatprep.mubr.f32.mxu0 0.0
        %1132 = vmatmul.mubr.f32.gmra.mrb[0].mxu0 %v1059
        %v1133 = vpop.f32.mrb[0].mxu0
        %v1134 = vadd.f32 0.0, %v1133
        %v1135 = vpop.f32.mrb[0].mxu0
        %v1136 = vadd.f32 0.0, %v1135
        %1137 = vdwg.mxu0
        %v1138 = vadd.f32 %v1054, %v1134
        %v1139 = vadd.f32 %v1055, %v1136
        %v1140 = vmax.f32 %v1138, 0.0
        %v1141 = vmax.f32 %v1139, 0.0
        %v1142 = vld [vmem:[%s5] sm:$0xf]
        %1144 = vset.pattern.permute.xlu0 0
        %1145 = vperm.xlu0 %1144, %v1142
        %v1146 = vpop.permute.xlu0 %1145
        %1148 = vrot.lane.b32.xlu0 %v1140, 127
        %v1149 = vpop.permute.xlu0 %1148
        %1150 = vrot.lane.b32.xlu0 %v1141, 127
        %v1151 = vpop.permute.xlu0 %1150
        %v1152 = vsel %vm277, %v1149, %v1151
        %v1153 = vsel %vm277, %v1151, %v1149
        %1154 = vrot.lane.b32.xlu0 %v1140, 1
        %v1155 = vpop.permute.xlu0 %1154
        %1156 = vrot.lane.b32.xlu0 %v1141, 1
        %v1157 = vpop.permute.xlu0 %1156
        %v1158 = vsel %vm284, %v1155, %v1157
        %v1159 = vsel %vm284, %v1157, %v1155
        %v1160 = vsel %vm296, %v1152, %v1159
        %v1161 = vsel %vm297, %v1153, %v1158
        %v1162 = vsel %vm309, %v1159, %v1152
        %v1163 = vsel %vm310, %v1158, %v1153
        %1164 = vrot.lane.b32.xlu0 %v1160, 112
        %v1165 = vpop.permute.xlu0 %1164
        %1166 = vrot.lane.b32.xlu0 %v1161, 112
        %v1167 = vpop.permute.xlu0 %1166
        %v1168 = vsel %vm317, %v1165, %v1167
        %v1169 = vsel %vm317, %v1167, %v1165
        %1170 = vrot.lane.b32.xlu0 %v1160, 16
        %v1171 = vpop.permute.xlu0 %1170
        %1172 = vrot.lane.b32.xlu0 %v1161, 16
        %v1173 = vpop.permute.xlu0 %1172
        %v1174 = vsel %vm324, %v1171, %v1173
        %v1175 = vsel %vm324, %v1173, %v1171
        %v1176 = vsel %vm336, %v1168, %v1175
        %v1177 = vsel %vm337, %v1169, %v1174
        %v1178 = vsel %vm349, %v1175, %v1168
        %v1179 = vsel %vm350, %v1174, %v1169
        %1180 = vrot.lane.b32.xlu0 %v1140, 112
        %v1181 = vpop.permute.xlu0 %1180
        %1182 = vrot.lane.b32.xlu0 %v1141, 112
        %v1183 = vpop.permute.xlu0 %1182
        %v1184 = vsel %vm317, %v1181, %v1183
        %v1185 = vsel %vm317, %v1183, %v1181
        %1186 = vrot.lane.b32.xlu0 %v1140, 16
        %v1187 = vpop.permute.xlu0 %1186
        %1188 = vrot.lane.b32.xlu0 %v1141, 16
        %v1189 = vpop.permute.xlu0 %1188
        %v1190 = vsel %vm324, %v1187, %v1189
        %v1191 = vsel %vm324, %v1189, %v1187
        %v1192 = vsel %vm336, %v1184, %v1191
        %v1193 = vsel %vm337, %v1185, %v1190
        %v1194 = vsel %vm349, %v1191, %v1184
        %v1195 = vsel %vm350, %v1190, %v1185
        %1196 = vrot.lane.b32.xlu0 %v1162, 112
        %v1197 = vpop.permute.xlu0 %1196
        %1198 = vrot.lane.b32.xlu0 %v1163, 112
        %v1199 = vpop.permute.xlu0 %1198
        %v1200 = vsel %vm317, %v1197, %v1199
        %v1201 = vsel %vm317, %v1199, %v1197
        %1202 = vrot.lane.b32.xlu0 %v1162, 16
        %v1203 = vpop.permute.xlu0 %1202
        %1204 = vrot.lane.b32.xlu0 %v1163, 16
        %v1205 = vpop.permute.xlu0 %1204
        %v1206 = vsel %vm324, %v1203, %v1205
        %v1207 = vsel %vm324, %v1205, %v1203
        %v1208 = vsel %vm336, %v1200, %v1207
        %v1209 = vsel %vm337, %v1201, %v1206
        %v1210 = vsel %vm349, %v1207, %v1200
        %v1211 = vsel %vm350, %v1206, %v1201
        %v1212 = vld [vmem:[%s4] sm:$0xf]
        %v1214 = vsel %vm386, %v1212, 0
        %v1217 = vsel %vm390, %v1176, 0
        %v1220 = vsel %vm390, %v1177, 0
        %1222 = vmatprep.subr.mxu0 %v1220
        %1223 = vmatpush1.msra.mxu0 %v1217
        %1224 = vmatprep.subr.mxu0 0.0
        %1225 = vmatpush1.msra.mxu0 0.0
        %1226 = vmatprep.subr.mxu0 0.0
        %1227 = vmatpush1.msra.mxu0 0.0
        %1228 = vmatprep.subr.mxu0 0.0
        %1229 = vmatpush1.msra.mxu0 0.0
        %1230 = vmatprep.subr.mxu0 0.0
        %1231 = vmatpush1.msra.mxu0 0.0
        %1232 = vmatprep.subr.mxu0 0.0
        %1233 = vmatpush1.msra.mxu0 0.0
        %1234 = vmatprep.subr.mxu0 0.0
        %1235 = vmatpush1.msra.mxu0 0.0
        %1236 = vmatprep.subr.mxu0 0.0
        %1237 = vmatpush1.msra.mxu0 0.0
        %1238 = vmatprep.subr.mxu0 0.0
        %1239 = vmatpush1.msra.mxu0 0.0
        %1240 = vmatprep.subr.mxu0 0.0
        %1241 = vmatpush1.msra.mxu0 0.0
        %1242 = vmatprep.subr.mxu0 0.0
        %1243 = vmatpush1.msra.mxu0 0.0
        %1244 = vmatprep.subr.mxu0 0.0
        %1245 = vmatpush1.msra.mxu0 0.0
        %1246 = vmatprep.subr.mxu0 0.0
        %1247 = vmatpush1.msra.mxu0 0.0
        %1248 = vmatprep.subr.mxu0 0.0
        %1249 = vmatpush1.msra.mxu0 0.0
        %1250 = vmatprep.subr.mxu0 0.0
        %1251 = vmatpush1.msra.mxu0 0.0
        %1252 = vmatprep.subr.mxu0 0.0
        %1253 = vmatpush1.msra.mxu0 0.0
        %1254 = vmatprep.subr.mxu0 0.0
        %1255 = vmatpush1.msra.mxu0 0.0
        %1256 = vmatprep.subr.mxu0 0.0
        %1257 = vmatpush1.msra.mxu0 0.0
        %1258 = vmatprep.subr.mxu0 0.0
        %1259 = vmatpush1.msra.mxu0 0.0
        %1260 = vmatprep.subr.mxu0 0.0
        %1261 = vmatpush1.msra.mxu0 0.0
        %1262 = vmatprep.subr.mxu0 0.0
        %1263 = vmatpush1.msra.mxu0 0.0
        %1264 = vmatprep.subr.mxu0 0.0
        %1265 = vmatpush1.msra.mxu0 0.0
        %1266 = vmatprep.subr.mxu0 0.0
        %1267 = vmatpush1.msra.mxu0 0.0
        %1268 = vmatprep.subr.mxu0 0.0
        %1269 = vmatpush1.msra.mxu0 0.0
        %1270 = vmatprep.subr.mxu0 0.0
        %1271 = vmatpush1.msra.mxu0 0.0
        %1272 = vmatprep.subr.mxu0 0.0
        %1273 = vmatpush1.msra.mxu0 0.0
        %1274 = vmatprep.subr.mxu0 0.0
        %1275 = vmatpush1.msra.mxu0 0.0
        %1276 = vmatprep.subr.mxu0 0.0
        %1277 = vmatpush1.msra.mxu0 0.0
        %1278 = vmatprep.subr.mxu0 0.0
        %1279 = vmatpush1.msra.mxu0 0.0
        %1280 = vmatprep.subr.mxu0 0.0
        %1281 = vmatpush1.msra.mxu0 0.0
        %1282 = vmatprep.subr.mxu0 0.0
        %1283 = vmatpush1.msra.mxu0 0.0
        %1284 = vmatprep.subr.mxu0 0.0
        %1285 = vmatpush1.msra.mxu0 0.0
        %1286 = vmatprep.mubr.f32.mxu0 0.0
        %1287 = vmatmul.mubr.f32.gmra.mrb[0].mxu0 %v1214
        %v1288 = vpop.f32.mrb[0].mxu0
        %v1289 = vadd.f32 0.0, %v1288
        %v1290 = vpop.f32.mrb[0].mxu0
        %v1291 = vadd.f32 0.0, %v1290
        %1292 = vdwg.mxu0
        %v1293 = vadd.f32 %v1146, %v1289
        %v1294 = vadd.f32 %v1146, %v1291
        %s1295 = scalar_lea.vmem %s4, 4
        %v1296 = vld [vmem:[%s1295] sm:$0xf]
        %v1298 = vsel %vm386, %v1296, 0
        %v1301 = vsel %vm390, %v1192, 0
        %v1304 = vsel %vm390, %v1193, 0
        %1306 = vmatprep.subr.mxu0 %v1304
        %1307 = vmatpush1.msra.mxu0 %v1301
        %1308 = vmatprep.subr.mxu0 0.0
        %1309 = vmatpush1.msra.mxu0 0.0
        %1310 = vmatprep.subr.mxu0 0.0
        %1311 = vmatpush1.msra.mxu0 0.0
        %1312 = vmatprep.subr.mxu0 0.0
        %1313 = vmatpush1.msra.mxu0 0.0
        %1314 = vmatprep.subr.mxu0 0.0
        %1315 = vmatpush1.msra.mxu0 0.0
        %1316 = vmatprep.subr.mxu0 0.0
        %1317 = vmatpush1.msra.mxu0 0.0
        %1318 = vmatprep.subr.mxu0 0.0
        %1319 = vmatpush1.msra.mxu0 0.0
        %1320 = vmatprep.subr.mxu0 0.0
        %1321 = vmatpush1.msra.mxu0 0.0
        %1322 = vmatprep.subr.mxu0 0.0
        %1323 = vmatpush1.msra.mxu0 0.0
        %1324 = vmatprep.subr.mxu0 0.0
        %1325 = vmatpush1.msra.mxu0 0.0
        %1326 = vmatprep.subr.mxu0 0.0
        %1327 = vmatpush1.msra.mxu0 0.0
        %1328 = vmatprep.subr.mxu0 0.0
        %1329 = vmatpush1.msra.mxu0 0.0
        %1330 = vmatprep.subr.mxu0 0.0
        %1331 = vmatpush1.msra.mxu0 0.0
        %1332 = vmatprep.subr.mxu0 0.0
        %1333 = vmatpush1.msra.mxu0 0.0
        %1334 = vmatprep.subr.mxu0 0.0
        %1335 = vmatpush1.msra.mxu0 0.0
        %1336 = vmatprep.subr.mxu0 0.0
        %1337 = vmatpush1.msra.mxu0 0.0
        %1338 = vmatprep.subr.mxu0 0.0
        %1339 = vmatpush1.msra.mxu0 0.0
        %1340 = vmatprep.subr.mxu0 0.0
        %1341 = vmatpush1.msra.mxu0 0.0
        %1342 = vmatprep.subr.mxu0 0.0
        %1343 = vmatpush1.msra.mxu0 0.0
        %1344 = vmatprep.subr.mxu0 0.0
        %1345 = vmatpush1.msra.mxu0 0.0
        %1346 = vmatprep.subr.mxu0 0.0
        %1347 = vmatpush1.msra.mxu0 0.0
        %1348 = vmatprep.subr.mxu0 0.0
        %1349 = vmatpush1.msra.mxu0 0.0
        %1350 = vmatprep.subr.mxu0 0.0
        %1351 = vmatpush1.msra.mxu0 0.0
        %1352 = vmatprep.subr.mxu0 0.0
        %1353 = vmatpush1.msra.mxu0 0.0
        %1354 = vmatprep.subr.mxu0 0.0
        %1355 = vmatpush1.msra.mxu0 0.0
        %1356 = vmatprep.subr.mxu0 0.0
        %1357 = vmatpush1.msra.mxu0 0.0
        %1358 = vmatprep.subr.mxu0 0.0
        %1359 = vmatpush1.msra.mxu0 0.0
        %1360 = vmatprep.subr.mxu0 0.0
        %1361 = vmatpush1.msra.mxu0 0.0
        %1362 = vmatprep.subr.mxu0 0.0
        %1363 = vmatpush1.msra.mxu0 0.0
        %1364 = vmatprep.subr.mxu0 0.0
        %1365 = vmatpush1.msra.mxu0 0.0
        %1366 = vmatprep.subr.mxu0 0.0
        %1367 = vmatpush1.msra.mxu0 0.0
        %1368 = vmatprep.subr.mxu0 0.0
        %1369 = vmatpush1.msra.mxu0 0.0
        %1370 = vmatprep.mubr.f32.mxu0 0.0
        %1371 = vmatmul.mubr.f32.gmra.mrb[0].mxu0 %v1298
        %v1372 = vpop.f32.mrb[0].mxu0
        %v1373 = vadd.f32 0.0, %v1372
        %v1374 = vpop.f32.mrb[0].mxu0
        %v1375 = vadd.f32 0.0, %v1374
        %1376 = vdwg.mxu0
        %v1377 = vadd.f32 %v1293, %v1373
        %v1378 = vadd.f32 %v1294, %v1375
        %s1379 = scalar_lea.vmem %s4, 8
        %v1380 = vld [vmem:[%s1379] sm:$0xf]
        %v1382 = vsel %vm386, %v1380, 0
        %v1385 = vsel %vm390, %v1208, 0
        %v1388 = vsel %vm390, %v1209, 0
        %1390 = vmatprep.subr.mxu0 %v1388
        %1391 = vmatpush1.msra.mxu0 %v1385
        %1392 = vmatprep.subr.mxu0 0.0
        %1393 = vmatpush1.msra.mxu0 0.0
        %1394 = vmatprep.subr.mxu0 0.0
        %1395 = vmatpush1.msra.mxu0 0.0
        %1396 = vmatprep.subr.mxu0 0.0
        %1397 = vmatpush1.msra.mxu0 0.0
        %1398 = vmatprep.subr.mxu0 0.0
        %1399 = vmatpush1.msra.mxu0 0.0
        %1400 = vmatprep.subr.mxu0 0.0
        %1401 = vmatpush1.msra.mxu0 0.0
        %1402 = vmatprep.subr.mxu0 0.0
        %1403 = vmatpush1.msra.mxu0 0.0
        %1404 = vmatprep.subr.mxu0 0.0
        %1405 = vmatpush1.msra.mxu0 0.0
        %1406 = vmatprep.subr.mxu0 0.0
        %1407 = vmatpush1.msra.mxu0 0.0
        %1408 = vmatprep.subr.mxu0 0.0
        %1409 = vmatpush1.msra.mxu0 0.0
        %1410 = vmatprep.subr.mxu0 0.0
        %1411 = vmatpush1.msra.mxu0 0.0
        %1412 = vmatprep.subr.mxu0 0.0
        %1413 = vmatpush1.msra.mxu0 0.0
        %1414 = vmatprep.subr.mxu0 0.0
        %1415 = vmatpush1.msra.mxu0 0.0
        %1416 = vmatprep.subr.mxu0 0.0
        %1417 = vmatpush1.msra.mxu0 0.0
        %1418 = vmatprep.subr.mxu0 0.0
        %1419 = vmatpush1.msra.mxu0 0.0
        %1420 = vmatprep.subr.mxu0 0.0
        %1421 = vmatpush1.msra.mxu0 0.0
        %1422 = vmatprep.subr.mxu0 0.0
        %1423 = vmatpush1.msra.mxu0 0.0
        %1424 = vmatprep.subr.mxu0 0.0
        %1425 = vmatpush1.msra.mxu0 0.0
        %1426 = vmatprep.subr.mxu0 0.0
        %1427 = vmatpush1.msra.mxu0 0.0
        %1428 = vmatprep.subr.mxu0 0.0
        %1429 = vmatpush1.msra.mxu0 0.0
        %1430 = vmatprep.subr.mxu0 0.0
        %1431 = vmatpush1.msra.mxu0 0.0
        %1432 = vmatprep.subr.mxu0 0.0
        %1433 = vmatpush1.msra.mxu0 0.0
        %1434 = vmatprep.subr.mxu0 0.0
        %1435 = vmatpush1.msra.mxu0 0.0
        %1436 = vmatprep.subr.mxu0 0.0
        %1437 = vmatpush1.msra.mxu0 0.0
        %1438 = vmatprep.subr.mxu0 0.0
        %1439 = vmatpush1.msra.mxu0 0.0
        %1440 = vmatprep.subr.mxu0 0.0
        %1441 = vmatpush1.msra.mxu0 0.0
        %1442 = vmatprep.subr.mxu0 0.0
        %1443 = vmatpush1.msra.mxu0 0.0
        %1444 = vmatprep.subr.mxu0 0.0
        %1445 = vmatpush1.msra.mxu0 0.0
        %1446 = vmatprep.subr.mxu0 0.0
        %1447 = vmatpush1.msra.mxu0 0.0
        %1448 = vmatprep.subr.mxu0 0.0
        %1449 = vmatpush1.msra.mxu0 0.0
        %1450 = vmatprep.subr.mxu0 0.0
        %1451 = vmatpush1.msra.mxu0 0.0
        %1452 = vmatprep.subr.mxu0 0.0
        %1453 = vmatpush1.msra.mxu0 0.0
        %1454 = vmatprep.mubr.f32.mxu0 0.0
        %1455 = vmatmul.mubr.f32.gmra.mrb[0].mxu0 %v1382
        %v1456 = vpop.f32.mrb[0].mxu0
        %v1457 = vadd.f32 0.0, %v1456
        %v1458 = vpop.f32.mrb[0].mxu0
        %v1459 = vadd.f32 0.0, %v1458
        %1460 = vdwg.mxu0
        %v1461 = vadd.f32 %v1377, %v1457
        %v1462 = vadd.f32 %v1378, %v1459
        %s1463 = scalar_lea.vmem %s4, 12
        %v1464 = vld [vmem:[%s1463] sm:$0xf]
        %v1466 = vsel %vm386, %v1464, 0
        %v1469 = vsel %vm390, %v1160, 0
        %v1472 = vsel %vm390, %v1161, 0
        %1474 = vmatprep.subr.mxu0 %v1472
        %1475 = vmatpush1.msra.mxu0 %v1469
        %1476 = vmatprep.subr.mxu0 0.0
        %1477 = vmatpush1.msra.mxu0 0.0
        %1478 = vmatprep.subr.mxu0 0.0
        %1479 = vmatpush1.msra.mxu0 0.0
        %1480 = vmatprep.subr.mxu0 0.0
        %1481 = vmatpush1.msra.mxu0 0.0
        %1482 = vmatprep.subr.mxu0 0.0
        %1483 = vmatpush1.msra.mxu0 0.0
        %1484 = vmatprep.subr.mxu0 0.0
        %1485 = vmatpush1.msra.mxu0 0.0
        %1486 = vmatprep.subr.mxu0 0.0
        %1487 = vmatpush1.msra.mxu0 0.0
        %1488 = vmatprep.subr.mxu0 0.0
        %1489 = vmatpush1.msra.mxu0 0.0
        %1490 = vmatprep.subr.mxu0 0.0
        %1491 = vmatpush1.msra.mxu0 0.0
        %1492 = vmatprep.subr.mxu0 0.0
        %1493 = vmatpush1.msra.mxu0 0.0
        %1494 = vmatprep.subr.mxu0 0.0
        %1495 = vmatpush1.msra.mxu0 0.0
        %1496 = vmatprep.subr.mxu0 0.0
        %1497 = vmatpush1.msra.mxu0 0.0
        %1498 = vmatprep.subr.mxu0 0.0
        %1499 = vmatpush1.msra.mxu0 0.0
        %1500 = vmatprep.subr.mxu0 0.0
        %1501 = vmatpush1.msra.mxu0 0.0
        %1502 = vmatprep.subr.mxu0 0.0
        %1503 = vmatpush1.msra.mxu0 0.0
        %1504 = vmatprep.subr.mxu0 0.0
        %1505 = vmatpush1.msra.mxu0 0.0
        %1506 = vmatprep.subr.mxu0 0.0
        %1507 = vmatpush1.msra.mxu0 0.0
        %1508 = vmatprep.subr.mxu0 0.0
        %1509 = vmatpush1.msra.mxu0 0.0
        %1510 = vmatprep.subr.mxu0 0.0
        %1511 = vmatpush1.msra.mxu0 0.0
        %1512 = vmatprep.subr.mxu0 0.0
        %1513 = vmatpush1.msra.mxu0 0.0
        %1514 = vmatprep.subr.mxu0 0.0
        %1515 = vmatpush1.msra.mxu0 0.0
        %1516 = vmatprep.subr.mxu0 0.0
        %1517 = vmatpush1.msra.mxu0 0.0
        %1518 = vmatprep.subr.mxu0 0.0
        %1519 = vmatpush1.msra.mxu0 0.0
        %1520 = vmatprep.subr.mxu0 0.0
        %1521 = vmatpush1.msra.mxu0 0.0
        %1522 = vmatprep.subr.mxu0 0.0
        %1523 = vmatpush1.msra.mxu0 0.0
        %1524 = vmatprep.subr.mxu0 0.0
        %1525 = vmatpush1.msra.mxu0 0.0
        %1526 = vmatprep.subr.mxu0 0.0
        %1527 = vmatpush1.msra.mxu0 0.0
        %1528 = vmatprep.subr.mxu0 0.0
        %1529 = vmatpush1.msra.mxu0 0.0
        %1530 = vmatprep.subr.mxu0 0.0
        %1531 = vmatpush1.msra.mxu0 0.0
        %1532 = vmatprep.subr.mxu0 0.0
        %1533 = vmatpush1.msra.mxu0 0.0
        %1534 = vmatprep.subr.mxu0 0.0
        %1535 = vmatpush1.msra.mxu0 0.0
        %1536 = vmatprep.subr.mxu0 0.0
        %1537 = vmatpush1.msra.mxu0 0.0
        %1538 = vmatprep.mubr.f32.mxu0 0.0
        %1539 = vmatmul.mubr.f32.gmra.mrb[0].mxu0 %v1466
        %v1540 = vpop.f32.mrb[0].mxu0
        %v1541 = vadd.f32 0.0, %v1540
        %v1542 = vpop.f32.mrb[0].mxu0
        %v1543 = vadd.f32 0.0, %v1542
        %1544 = vdwg.mxu0
        %v1545 = vadd.f32 %v1461, %v1541
        %v1546 = vadd.f32 %v1462, %v1543
        %s1547 = scalar_lea.vmem %s4, 16
        %v1548 = vld [vmem:[%s1547] sm:$0xf]
        %v1550 = vsel %vm386, %v1548, 0
        %v1553 = vsel %vm390, %v1140, 0
        %v1556 = vsel %vm390, %v1141, 0
        %1558 = vmatprep.subr.mxu0 %v1556
        %1559 = vmatpush1.msra.mxu0 %v1553
        %1560 = vmatprep.subr.mxu0 0.0
        %1561 = vmatpush1.msra.mxu0 0.0
        %1562 = vmatprep.subr.mxu0 0.0
        %1563 = vmatpush1.msra.mxu0 0.0
        %1564 = vmatprep.subr.mxu0 0.0
        %1565 = vmatpush1.msra.mxu0 0.0
        %1566 = vmatprep.subr.mxu0 0.0
        %1567 = vmatpush1.msra.mxu0 0.0
        %1568 = vmatprep.subr.mxu0 0.0
        %1569 = vmatpush1.msra.mxu0 0.0
        %1570 = vmatprep.subr.mxu0 0.0
        %1571 = vmatpush1.msra.mxu0 0.0
        %1572 = vmatprep.subr.mxu0 0.0
        %1573 = vmatpush1.msra.mxu0 0.0
        %1574 = vmatprep.subr.mxu0 0.0
        %1575 = vmatpush1.msra.mxu0 0.0
        %1576 = vmatprep.subr.mxu0 0.0
        %1577 = vmatpush1.msra.mxu0 0.0
        %1578 = vmatprep.subr.mxu0 0.0
        %1579 = vmatpush1.msra.mxu0 0.0
        %1580 = vmatprep.subr.mxu0 0.0
        %1581 = vmatpush1.msra.mxu0 0.0
        %1582 = vmatprep.subr.mxu0 0.0
        %1583 = vmatpush1.msra.mxu0 0.0
        %1584 = vmatprep.subr.mxu0 0.0
        %1585 = vmatpush1.msra.mxu0 0.0
        %1586 = vmatprep.subr.mxu0 0.0
        %1587 = vmatpush1.msra.mxu0 0.0
        %1588 = vmatprep.subr.mxu0 0.0
        %1589 = vmatpush1.msra.mxu0 0.0
        %1590 = vmatprep.subr.mxu0 0.0
        %1591 = vmatpush1.msra.mxu0 0.0
        %1592 = vmatprep.subr.mxu0 0.0
        %1593 = vmatpush1.msra.mxu0 0.0
        %1594 = vmatprep.subr.mxu0 0.0
        %1595 = vmatpush1.msra.mxu0 0.0
        %1596 = vmatprep.subr.mxu0 0.0
        %1597 = vmatpush1.msra.mxu0 0.0
        %1598 = vmatprep.subr.mxu0 0.0
        %1599 = vmatpush1.msra.mxu0 0.0
        %1600 = vmatprep.subr.mxu0 0.0
        %1601 = vmatpush1.msra.mxu0 0.0
        %1602 = vmatprep.subr.mxu0 0.0
        %1603 = vmatpush1.msra.mxu0 0.0
        %1604 = vmatprep.subr.mxu0 0.0
        %1605 = vmatpush1.msra.mxu0 0.0
        %1606 = vmatprep.subr.mxu0 0.0
        %1607 = vmatpush1.msra.mxu0 0.0
        %1608 = vmatprep.subr.mxu0 0.0
        %1609 = vmatpush1.msra.mxu0 0.0
        %1610 = vmatprep.subr.mxu0 0.0
        %1611 = vmatpush1.msra.mxu0 0.0
        %1612 = vmatprep.subr.mxu0 0.0
        %1613 = vmatpush1.msra.mxu0 0.0
        %1614 = vmatprep.subr.mxu0 0.0
        %1615 = vmatpush1.msra.mxu0 0.0
        %1616 = vmatprep.subr.mxu0 0.0
        %1617 = vmatpush1.msra.mxu0 0.0
        %1618 = vmatprep.subr.mxu0 0.0
        %1619 = vmatpush1.msra.mxu0 0.0
        %1620 = vmatprep.subr.mxu0 0.0
        %1621 = vmatpush1.msra.mxu0 0.0
        %1622 = vmatprep.mubr.f32.mxu0 0.0
        %1623 = vmatmul.mubr.f32.gmra.mrb[0].mxu0 %v1550
        %v1624 = vpop.f32.mrb[0].mxu0
        %v1625 = vadd.f32 0.0, %v1624
        %v1626 = vpop.f32.mrb[0].mxu0
        %v1627 = vadd.f32 0.0, %v1626
        %1628 = vdwg.mxu0
        %v1629 = vadd.f32 %v1545, %v1625
        %v1630 = vadd.f32 %v1546, %v1627
        %s1631 = scalar_lea.vmem %s4, 20
        %v1632 = vld [vmem:[%s1631] sm:$0xf]
        %v1634 = vsel %vm386, %v1632, 0
        %v1637 = vsel %vm390, %v1162, 0
        %v1640 = vsel %vm390, %v1163, 0
        %1642 = vmatprep.subr.mxu0 %v1640
        %1643 = vmatpush1.msra.mxu0 %v1637
        %1644 = vmatprep.subr.mxu0 0.0
        %1645 = vmatpush1.msra.mxu0 0.0
        %1646 = vmatprep.subr.mxu0 0.0
        %1647 = vmatpush1.msra.mxu0 0.0
        %1648 = vmatprep.subr.mxu0 0.0
        %1649 = vmatpush1.msra.mxu0 0.0
        %1650 = vmatprep.subr.mxu0 0.0
        %1651 = vmatpush1.msra.mxu0 0.0
        %1652 = vmatprep.subr.mxu0 0.0
        %1653 = vmatpush1.msra.mxu0 0.0
        %1654 = vmatprep.subr.mxu0 0.0
        %1655 = vmatpush1.msra.mxu0 0.0
        %1656 = vmatprep.subr.mxu0 0.0
        %1657 = vmatpush1.msra.mxu0 0.0
        %1658 = vmatprep.subr.mxu0 0.0
        %1659 = vmatpush1.msra.mxu0 0.0
        %1660 = vmatprep.subr.mxu0 0.0
        %1661 = vmatpush1.msra.mxu0 0.0
        %1662 = vmatprep.subr.mxu0 0.0
        %1663 = vmatpush1.msra.mxu0 0.0
        %1664 = vmatprep.subr.mxu0 0.0
        %1665 = vmatpush1.msra.mxu0 0.0
        %1666 = vmatprep.subr.mxu0 0.0
        %1667 = vmatpush1.msra.mxu0 0.0
        %1668 = vmatprep.subr.mxu0 0.0
        %1669 = vmatpush1.msra.mxu0 0.0
        %1670 = vmatprep.subr.mxu0 0.0
        %1671 = vmatpush1.msra.mxu0 0.0
        %1672 = vmatprep.subr.mxu0 0.0
        %1673 = vmatpush1.msra.mxu0 0.0
        %1674 = vmatprep.subr.mxu0 0.0
        %1675 = vmatpush1.msra.mxu0 0.0
        %1676 = vmatprep.subr.mxu0 0.0
        %1677 = vmatpush1.msra.mxu0 0.0
        %1678 = vmatprep.subr.mxu0 0.0
        %1679 = vmatpush1.msra.mxu0 0.0
        %1680 = vmatprep.subr.mxu0 0.0
        %1681 = vmatpush1.msra.mxu0 0.0
        %1682 = vmatprep.subr.mxu0 0.0
        %1683 = vmatpush1.msra.mxu0 0.0
        %1684 = vmatprep.subr.mxu0 0.0
        %1685 = vmatpush1.msra.mxu0 0.0
        %1686 = vmatprep.subr.mxu0 0.0
        %1687 = vmatpush1.msra.mxu0 0.0
        %1688 = vmatprep.subr.mxu0 0.0
        %1689 = vmatpush1.msra.mxu0 0.0
        %1690 = vmatprep.subr.mxu0 0.0
        %1691 = vmatpush1.msra.mxu0 0.0
        %1692 = vmatprep.subr.mxu0 0.0
        %1693 = vmatpush1.msra.mxu0 0.0
        %1694 = vmatprep.subr.mxu0 0.0
        %1695 = vmatpush1.msra.mxu0 0.0
        %1696 = vmatprep.subr.mxu0 0.0
        %1697 = vmatpush1.msra.mxu0 0.0
        %1698 = vmatprep.subr.mxu0 0.0
        %1699 = vmatpush1.msra.mxu0 0.0
        %1700 = vmatprep.subr.mxu0 0.0
        %1701 = vmatpush1.msra.mxu0 0.0
        %1702 = vmatprep.subr.mxu0 0.0
        %1703 = vmatpush1.msra.mxu0 0.0
        %1704 = vmatprep.subr.mxu0 0.0
        %1705 = vmatpush1.msra.mxu0 0.0
        %1706 = vmatprep.mubr.f32.mxu0 0.0
        %1707 = vmatmul.mubr.f32.gmra.mrb[0].mxu0 %v1634
        %v1708 = vpop.f32.mrb[0].mxu0
        %v1709 = vadd.f32 0.0, %v1708
        %v1710 = vpop.f32.mrb[0].mxu0
        %v1711 = vadd.f32 0.0, %v1710
        %1712 = vdwg.mxu0
        %v1713 = vadd.f32 %v1629, %v1709
        %v1714 = vadd.f32 %v1630, %v1711
        %s1715 = scalar_lea.vmem %s4, 24
        %v1716 = vld [vmem:[%s1715] sm:$0xf]
        %v1718 = vsel %vm386, %v1716, 0
        %v1721 = vsel %vm390, %v1178, 0
        %v1724 = vsel %vm390, %v1179, 0
        %1726 = vmatprep.subr.mxu0 %v1724
        %1727 = vmatpush1.msra.mxu0 %v1721
        %1728 = vmatprep.subr.mxu0 0.0
        %1729 = vmatpush1.msra.mxu0 0.0
        %1730 = vmatprep.subr.mxu0 0.0
        %1731 = vmatpush1.msra.mxu0 0.0
        %1732 = vmatprep.subr.mxu0 0.0
        %1733 = vmatpush1.msra.mxu0 0.0
        %1734 = vmatprep.subr.mxu0 0.0
        %1735 = vmatpush1.msra.mxu0 0.0
        %1736 = vmatprep.subr.mxu0 0.0
        %1737 = vmatpush1.msra.mxu0 0.0
        %1738 = vmatprep.subr.mxu0 0.0
        %1739 = vmatpush1.msra.mxu0 0.0
        %1740 = vmatprep.subr.mxu0 0.0
        %1741 = vmatpush1.msra.mxu0 0.0
        %1742 = vmatprep.subr.mxu0 0.0
        %1743 = vmatpush1.msra.mxu0 0.0
        %1744 = vmatprep.subr.mxu0 0.0
        %1745 = vmatpush1.msra.mxu0 0.0
        %1746 = vmatprep.subr.mxu0 0.0
        %1747 = vmatpush1.msra.mxu0 0.0
        %1748 = vmatprep.subr.mxu0 0.0
        %1749 = vmatpush1.msra.mxu0 0.0
        %1750 = vmatprep.subr.mxu0 0.0
        %1751 = vmatpush1.msra.mxu0 0.0
        %1752 = vmatprep.subr.mxu0 0.0
        %1753 = vmatpush1.msra.mxu0 0.0
        %1754 = vmatprep.subr.mxu0 0.0
        %1755 = vmatpush1.msra.mxu0 0.0
        %1756 = vmatprep.subr.mxu0 0.0
        %1757 = vmatpush1.msra.mxu0 0.0
        %1758 = vmatprep.subr.mxu0 0.0
        %1759 = vmatpush1.msra.mxu0 0.0
        %1760 = vmatprep.subr.mxu0 0.0
        %1761 = vmatpush1.msra.mxu0 0.0
        %1762 = vmatprep.subr.mxu0 0.0
        %1763 = vmatpush1.msra.mxu0 0.0
        %1764 = vmatprep.subr.mxu0 0.0
        %1765 = vmatpush1.msra.mxu0 0.0
        %1766 = vmatprep.subr.mxu0 0.0
        %1767 = vmatpush1.msra.mxu0 0.0
        %1768 = vmatprep.subr.mxu0 0.0
        %1769 = vmatpush1.msra.mxu0 0.0
        %1770 = vmatprep.subr.mxu0 0.0
        %1771 = vmatpush1.msra.mxu0 0.0
        %1772 = vmatprep.subr.mxu0 0.0
        %1773 = vmatpush1.msra.mxu0 0.0
        %1774 = vmatprep.subr.mxu0 0.0
        %1775 = vmatpush1.msra.mxu0 0.0
        %1776 = vmatprep.subr.mxu0 0.0
        %1777 = vmatpush1.msra.mxu0 0.0
        %1778 = vmatprep.subr.mxu0 0.0
        %1779 = vmatpush1.msra.mxu0 0.0
        %1780 = vmatprep.subr.mxu0 0.0
        %1781 = vmatpush1.msra.mxu0 0.0
        %1782 = vmatprep.subr.mxu0 0.0
        %1783 = vmatpush1.msra.mxu0 0.0
        %1784 = vmatprep.subr.mxu0 0.0
        %1785 = vmatpush1.msra.mxu0 0.0
        %1786 = vmatprep.subr.mxu0 0.0
        %1787 = vmatpush1.msra.mxu0 0.0
        %1788 = vmatprep.subr.mxu0 0.0
        %1789 = vmatpush1.msra.mxu0 0.0
        %1790 = vmatprep.mubr.f32.mxu0 0.0
        %1791 = vmatmul.mubr.f32.gmra.mrb[0].mxu0 %v1718
        %v1792 = vpop.f32.mrb[0].mxu0
        %v1793 = vadd.f32 0.0, %v1792
        %v1794 = vpop.f32.mrb[0].mxu0
        %v1795 = vadd.f32 0.0, %v1794
        %1796 = vdwg.mxu0
        %v1797 = vadd.f32 %v1713, %v1793
        %v1798 = vadd.f32 %v1714, %v1795
        %s1799 = scalar_lea.vmem %s4, 28
        %v1800 = vld [vmem:[%s1799] sm:$0xf]
        %v1802 = vsel %vm386, %v1800, 0
        %v1805 = vsel %vm390, %v1194, 0
        %v1808 = vsel %vm390, %v1195, 0
        %1810 = vmatprep.subr.mxu0 %v1808
        %1811 = vmatpush1.msra.mxu0 %v1805
        %1812 = vmatprep.subr.mxu0 0.0
        %1813 = vmatpush1.msra.mxu0 0.0
        %1814 = vmatprep.subr.mxu0 0.0
        %1815 = vmatpush1.msra.mxu0 0.0
        %1816 = vmatprep.subr.mxu0 0.0
        %1817 = vmatpush1.msra.mxu0 0.0
        %1818 = vmatprep.subr.mxu0 0.0
        %1819 = vmatpush1.msra.mxu0 0.0
        %1820 = vmatprep.subr.mxu0 0.0
        %1821 = vmatpush1.msra.mxu0 0.0
        %1822 = vmatprep.subr.mxu0 0.0
        %1823 = vmatpush1.msra.mxu0 0.0
        %1824 = vmatprep.subr.mxu0 0.0
        %1825 = vmatpush1.msra.mxu0 0.0
        %1826 = vmatprep.subr.mxu0 0.0
        %1827 = vmatpush1.msra.mxu0 0.0
        %1828 = vmatprep.subr.mxu0 0.0
        %1829 = vmatpush1.msra.mxu0 0.0
        %1830 = vmatprep.subr.mxu0 0.0
        %1831 = vmatpush1.msra.mxu0 0.0
        %1832 = vmatprep.subr.mxu0 0.0
        %1833 = vmatpush1.msra.mxu0 0.0
        %1834 = vmatprep.subr.mxu0 0.0
        %1835 = vmatpush1.msra.mxu0 0.0
        %1836 = vmatprep.subr.mxu0 0.0
        %1837 = vmatpush1.msra.mxu0 0.0
        %1838 = vmatprep.subr.mxu0 0.0
        %1839 = vmatpush1.msra.mxu0 0.0
        %1840 = vmatprep.subr.mxu0 0.0
        %1841 = vmatpush1.msra.mxu0 0.0
        %1842 = vmatprep.subr.mxu0 0.0
        %1843 = vmatpush1.msra.mxu0 0.0
        %1844 = vmatprep.subr.mxu0 0.0
        %1845 = vmatpush1.msra.mxu0 0.0
        %1846 = vmatprep.subr.mxu0 0.0
        %1847 = vmatpush1.msra.mxu0 0.0
        %1848 = vmatprep.subr.mxu0 0.0
        %1849 = vmatpush1.msra.mxu0 0.0
        %1850 = vmatprep.subr.mxu0 0.0
        %1851 = vmatpush1.msra.mxu0 0.0
        %1852 = vmatprep.subr.mxu0 0.0
        %1853 = vmatpush1.msra.mxu0 0.0
        %1854 = vmatprep.subr.mxu0 0.0
        %1855 = vmatpush1.msra.mxu0 0.0
        %1856 = vmatprep.subr.mxu0 0.0
        %1857 = vmatpush1.msra.mxu0 0.0
        %1858 = vmatprep.subr.mxu0 0.0
        %1859 = vmatpush1.msra.mxu0 0.0
        %1860 = vmatprep.subr.mxu0 0.0
        %1861 = vmatpush1.msra.mxu0 0.0
        %1862 = vmatprep.subr.mxu0 0.0
        %1863 = vmatpush1.msra.mxu0 0.0
        %1864 = vmatprep.subr.mxu0 0.0
        %1865 = vmatpush1.msra.mxu0 0.0
        %1866 = vmatprep.subr.mxu0 0.0
        %1867 = vmatpush1.msra.mxu0 0.0
        %1868 = vmatprep.subr.mxu0 0.0
        %1869 = vmatpush1.msra.mxu0 0.0
        %1870 = vmatprep.subr.mxu0 0.0
        %1871 = vmatpush1.msra.mxu0 0.0
        %1872 = vmatprep.subr.mxu0 0.0
        %1873 = vmatpush1.msra.mxu0 0.0
        %1874 = vmatprep.mubr.f32.mxu0 0.0
        %1875 = vmatmul.mubr.f32.gmra.mrb[0].mxu0 %v1802
        %v1876 = vpop.f32.mrb[0].mxu0
        %v1877 = vadd.f32 0.0, %v1876
        %v1878 = vpop.f32.mrb[0].mxu0
        %v1879 = vadd.f32 0.0, %v1878
        %1880 = vdwg.mxu0
        %v1881 = vadd.f32 %v1797, %v1877
        %v1882 = vadd.f32 %v1798, %v1879
        %s1883 = scalar_lea.vmem %s4, 32
        %v1884 = vld [vmem:[%s1883] sm:$0xf]
        %v1886 = vsel %vm386, %v1884, 0
        %v1889 = vsel %vm390, %v1210, 0
        %v1892 = vsel %vm390, %v1211, 0
        %1894 = vmatprep.subr.mxu0 %v1892
        %1895 = vmatpush1.msra.mxu0 %v1889
        %1896 = vmatprep.subr.mxu0 0.0
        %1897 = vmatpush1.msra.mxu0 0.0
        %1898 = vmatprep.subr.mxu0 0.0
        %1899 = vmatpush1.msra.mxu0 0.0
        %1900 = vmatprep.subr.mxu0 0.0
        %1901 = vmatpush1.msra.mxu0 0.0
        %1902 = vmatprep.subr.mxu0 0.0
        %1903 = vmatpush1.msra.mxu0 0.0
        %1904 = vmatprep.subr.mxu0 0.0
        %1905 = vmatpush1.msra.mxu0 0.0
        %1906 = vmatprep.subr.mxu0 0.0
        %1907 = vmatpush1.msra.mxu0 0.0
        %1908 = vmatprep.subr.mxu0 0.0
        %1909 = vmatpush1.msra.mxu0 0.0
        %1910 = vmatprep.subr.mxu0 0.0
        %1911 = vmatpush1.msra.mxu0 0.0
        %1912 = vmatprep.subr.mxu0 0.0
        %1913 = vmatpush1.msra.mxu0 0.0
        %1914 = vmatprep.subr.mxu0 0.0
        %1915 = vmatpush1.msra.mxu0 0.0
        %1916 = vmatprep.subr.mxu0 0.0
        %1917 = vmatpush1.msra.mxu0 0.0
        %1918 = vmatprep.subr.mxu0 0.0
        %1919 = vmatpush1.msra.mxu0 0.0
        %1920 = vmatprep.subr.mxu0 0.0
        %1921 = vmatpush1.msra.mxu0 0.0
        %1922 = vmatprep.subr.mxu0 0.0
        %1923 = vmatpush1.msra.mxu0 0.0
        %1924 = vmatprep.subr.mxu0 0.0
        %1925 = vmatpush1.msra.mxu0 0.0
        %1926 = vmatprep.subr.mxu0 0.0
        %1927 = vmatpush1.msra.mxu0 0.0
        %1928 = vmatprep.subr.mxu0 0.0
        %1929 = vmatpush1.msra.mxu0 0.0
        %1930 = vmatprep.subr.mxu0 0.0
        %1931 = vmatpush1.msra.mxu0 0.0
        %1932 = vmatprep.subr.mxu0 0.0
        %1933 = vmatpush1.msra.mxu0 0.0
        %1934 = vmatprep.subr.mxu0 0.0
        %1935 = vmatpush1.msra.mxu0 0.0
        %1936 = vmatprep.subr.mxu0 0.0
        %1937 = vmatpush1.msra.mxu0 0.0
        %1938 = vmatprep.subr.mxu0 0.0
        %1939 = vmatpush1.msra.mxu0 0.0
        %1940 = vmatprep.subr.mxu0 0.0
        %1941 = vmatpush1.msra.mxu0 0.0
        %1942 = vmatprep.subr.mxu0 0.0
        %1943 = vmatpush1.msra.mxu0 0.0
        %1944 = vmatprep.subr.mxu0 0.0
        %1945 = vmatpush1.msra.mxu0 0.0
        %1946 = vmatprep.subr.mxu0 0.0
        %1947 = vmatpush1.msra.mxu0 0.0
        %1948 = vmatprep.subr.mxu0 0.0
        %1949 = vmatpush1.msra.mxu0 0.0
        %1950 = vmatprep.subr.mxu0 0.0
        %1951 = vmatpush1.msra.mxu0 0.0
        %1952 = vmatprep.subr.mxu0 0.0
        %1953 = vmatpush1.msra.mxu0 0.0
        %1954 = vmatprep.subr.mxu0 0.0
        %1955 = vmatpush1.msra.mxu0 0.0
        %1956 = vmatprep.subr.mxu0 0.0
        %1957 = vmatpush1.msra.mxu0 0.0
        %1958 = vmatprep.mubr.f32.mxu0 0.0
        %1959 = vmatmul.mubr.f32.gmra.mrb[0].mxu0 %v1886
        %v1960 = vpop.f32.mrb[0].mxu0
        %v1961 = vadd.f32 0.0, %v1960
        %v1962 = vpop.f32.mrb[0].mxu0
        %v1963 = vadd.f32 0.0, %v1962
        %1964 = vdwg.mxu0
        %v1965 = vadd.f32 %v1881, %v1961
        %v1966 = vadd.f32 %v1882, %v1963
        %v1969 = vcombine.low %v1965, %v1966
        %v1971 = vadd.f32 %v250, %v1969
        %1972 = vst [vmem:[%s244] sm:$0xff] %v1971
        %s1973 = sand.u32 %s159, 1
        %s1974 = scalar_lea.sflag [#allocation3], %s1973
        %s1975 = sand.u32 %s159, 1
        %s1976 = smul.addr %s1975, 8
        %s1977 = scalar_lea.vmem [#allocation2], %s1976
        // Predicated region
        $region45: #{tpu_custom_call.1} parent=43 // pred_check
          %p1978 = pneg %p169
        $region46: #{tpu_custom_call.1} parent=43 // pred_check_branch
          %1980 = sbr.rel (%p1978) target = $region48
        $region47: #{tpu_custom_call.1} parent=43 // pred_region
          %s1982 = ssub.s32 128, 128
          %1983 = vsyncadd %s1974, %s1982
          %s1984 = smul.addr %s20, 2
          %s1985 = smul.addr %s1984, 64
          %s1986 = scalar_lea.hbm %s6, %s1985
          %s1988 = sshll.u32 %s1977, 4
          %s1989 = int_to_ptr.vmem [resolvable:$true] %s1988
          %1991 = dma.vmem_to_hbm [thread:$0]  %s1989, 128, %s1986, %s1974
        $region48: #{tpu_custom_call.1} parent=43 // pred_fallthru
          _
      $region44: #{tpu_custom_call.1} parent=5 // pred_fallthru
        _
      %p1992 = scmp.le.s32.totalorder 2, %s15
      // Predicated region
      $region49: #{tpu_custom_call.1} parent=5 // pred_check
        %p1993 = pneg %p1992
      $region50: #{tpu_custom_call.1} parent=5 // pred_check_branch
        %1995 = sbr.rel (%p1993) target = $region52
      $region51: #{tpu_custom_call.1} parent=5 // pred_region
        %s1996 = ssub.s32 %s15, 2
        // Predicated region
        $region53: #{tpu_custom_call.1} parent=51 // pred_check
          %p1997 = pneg %p175
        $region54: #{tpu_custom_call.1} parent=51 // pred_check_branch
          %1999 = sbr.rel (%p1997) target = $region56
        $region55: #{tpu_custom_call.1} parent=51 // pred_region
          %s2000 = sand.u32 %s160, 1
          %s2001 = scalar_lea.sflag [#allocation3], %s2000
          %s2002 = sand.u32 %s160, 1
          %s2003 = smul.addr %s2002, 8
          %s2004 = scalar_lea.vmem [#allocation2], %s2003
          %2005 = dma.done %s2001, 128
        $region56: #{tpu_custom_call.1} parent=51 // pred_fallthru
          _
      $region52: #{tpu_custom_call.1} parent=5 // pred_fallthru
        _
    $region6: #{tpu_custom_call.1} parent=1 // loop_footer
      %s19 = sadd.s32 1, %s15
    $region7: #{tpu_custom_call.1} parent=1 // loop_footer_branch
      %14 = sbr.rel target = $region3
    $region8: #{tpu_custom_call.1} parent=1 // loop_exit
      _
    %2006 = vsyncpa [#allocation3], 1
    %s2007 = scalar_lea.sflag [#allocation3], 1
    %2008 = vsyncpa %s2007, 1

</llo_original>
